<compile_context>
chip_gen: v5e
topology: v5e:2x2
jax: 0.10.0
libtpu: 0.0.40
codegen_flags: <defaults>
</compile_context>

<pallas_src>
import functools

import numpy as np
import jax
import jax.numpy as jnp
from jax import lax
from jax.experimental import pallas as pl
from jax.experimental.pallas import tpu as pltpu


# ---------------------------------------------------------------------------
# Constant matrices built on the host (plain numpy).
# ---------------------------------------------------------------------------
def _bilinear_up2_matrix(n):
    """(2n, n) matrix of a 2x bilinear upsample, PyTorch align_corners=False."""
    i = np.arange(2 * n)
    src = np.clip((i + 0.5) / 2.0 - 0.5, 0.0, None)
    i0 = np.minimum(np.floor(src).astype(np.int64), n - 1)
    i1 = np.minimum(i0 + 1, n - 1)
    frac = (src - i0).astype(np.float32)
    U = np.zeros((2 * n, n), np.float32)
    U[np.arange(2 * n), i0] += 1.0 - frac
    U[np.arange(2 * n), i1] += frac
    return U


def _upsample_pad_matrix(H, W, p0, n_cols):
    """(H*W, n_cols) matrix: flat image -> flat zero-padded 2x-upsampled image
    placed at column offset p0 (rest of the columns are exact zeros)."""
    Hu, Wu = 2 * H, 2 * W
    Hp, Wp = Hu + 2, Wu + 2
    Uh = _bilinear_up2_matrix(H)                       # (Hu, H)
    Uw = _bilinear_up2_matrix(W)                       # (Wu, W)
    Uhp = np.zeros((Hp, H), np.float32); Uhp[1:1 + Hu] = Uh   # zero top/bottom pad rows
    Uwp = np.zeros((Wp, W), np.float32); Uwp[1:1 + Wu] = Uw   # zero left/right pad cols
    # M[h*W + w, r*Wp + s] = Uhp[r, h] * Uwp[s, w]
    M = np.einsum('rh,sw->hwrs', Uhp, Uwp).reshape(H * W, Hp * Wp)
    out = np.zeros((H * W, n_cols), np.float32)
    out[:, p0:p0 + Hp * Wp] = M
    return out


# ---------------------------------------------------------------------------
# Kernel: Bt images per grid step, (batch*channels) on sublanes, flat spatial
# (Hu rows x Wp lanes each) on the 128-lane minor dim.
# ---------------------------------------------------------------------------
def _last_up_kernel(x_ref, up_ref, w1_ref, s1_ref, b1_ref,
                    w2_ref, s2_ref, b2_ref, mask_ref,
                    o_ref, pad_ref, stack_ref, *, H, W, P0):
    G = x_ref.shape[0]                   # Bt * C rows on sublanes
    Hu, Wu = 2 * H, 2 * W
    Wp = Wu + 2
    Lp = Hu * Wp                         # lane-dense working width
    head = P0 + Wp + 1                   # flat offset of interior pixel (1,1); 128-aligned

    # ---- bilinear 2x upsample + zero padding: ONE MXU matmul, flat layout.
    # Writes the whole slab, so every border/pad column is an exact zero.
    pad_ref[...] = jnp.dot(x_ref[...].astype(jnp.float32), up_ref[...],
                           preferred_element_type=jnp.float32)

    def conv3x3_bn_relu(w_ref, s_ref, b_ref):
        # Sublane im2col: 9 shifted copies of the slab stacked along sublanes
        # (each store is 8-sublane aligned since G == 8), then a single
        # (G, 9G) x (9G, Lp) MXU matmul instead of 9 tiny K=C pushes.
        for dy in range(3):
            for dx in range(3):
                k = dy * 3 + dx
                base = P0 + dy * Wp + dx                     # static offsets
                stack_ref[k * G:(k + 1) * G, :] = pad_ref[:, base:base + Lp]
        acc = jnp.dot(w_ref[...], stack_ref[...],
                      preferred_element_type=jnp.float32)    # (G, Lp)
        return jnp.maximum(acc * s_ref[...] + b_ref[...], 0.0)   # folded BN + ReLU

    h1 = conv3x3_bn_relu(w1_ref, s1_ref, b1_ref)             # (G, Lp)

    # ---- interior-only, 128-lane-aligned re-pad store (borders already zero;
    # mask re-zeroes the 2 carried pad columns per row).
    pad_ref[:, head:head + Lp] = h1 * mask_ref[...]

    h2 = conv3x3_bn_relu(w2_ref, s2_ref, b2_ref)             # (G, Lp)

    # Lane-dense store; the 2 junk pad columns per row are cropped in the wrapper.
    o_ref[...] = h2.astype(o_ref.dtype)


# ---------------------------------------------------------------------------
# Wrapper.
# ---------------------------------------------------------------------------
def last_up_pallas(x, params):
    """x: (B, C, H, W) NCHW float32. params: (w1, s1, b1, w2, s2, b2), wK: (C, C, 3, 3)."""
    w1, s1, b1, w2, s2, b2 = params
    B, C, H, W = x.shape
    Hu, Wu = 2 * H, 2 * W
    Hp, Wp = Hu + 2, Wu + 2
    Lp = Hu * Wp

    # Images per grid step: fill the 8-sublane vregs (G = Bt*C multiple of 8).
    Bt = 1
    for cand in range(B, 0, -1):
        if B % cand == 0 and (cand * C) % 8 == 0 and cand * C <= 64:
            Bt = cand
            break
    G = Bt * C
    nsteps = B // Bt

    # 128-lane-aligned interior offset; zero head baked into the upsample matrix.
    head = ((Wp + 1 + 127) // 128) * 128
    P0 = head - (Wp + 1)
    Npad = -(-(P0 + Hp * Wp + 2) // 128) * 128               # padded slab width

    up_mat = jnp.asarray(_upsample_pad_matrix(H, W, P0, Npad))   # (H*W, Npad)

    def stack_weights(w):
        # (C, C, 3, 3) -> (G, 9*G): taps stacked on K, block-diagonal over batch.
        w_t = jnp.transpose(w, (2, 3, 0, 1)).reshape(9, C, C)    # [k, co, ci]
        eye = jnp.eye(Bt, dtype=w.dtype)
        wbd = jnp.einsum('bB,kij->kbiBj', eye, w_t).reshape(9, G, G)
        return jnp.transpose(wbd, (1, 0, 2)).reshape(G, 9 * G)

    def tile_vec(v):
        return jnp.tile(v.reshape(1, C), (Bt, 1)).reshape(G, 1)

    w1s, w2s = stack_weights(w1), stack_weights(w2)
    s1_t, b1_t = tile_vec(s1), tile_vec(b1)
    s2_t, b2_t = tile_vec(s2), tile_vec(b2)

    # valid-lane mask for the flat padded-width layout (1 where column < Wu)
    mask = jnp.asarray((np.arange(Lp) % Wp < Wu).astype(np.float32).reshape(1, Lp))

    x_flat = x.reshape(B * C, H * W)     # free reshape, keeps NCHW (no transpose)

    kernel = functools.partial(_last_up_kernel, H=H, W=W, P0=P0)

    out_flat = pl.pallas_call(
        kernel,
        out_shape=jax.ShapeDtypeStruct((B * C, Lp), x.dtype),
        grid_spec=pltpu.PrefetchScalarGridSpec(
            num_scalar_prefetch=0,
            grid=(nsteps,),
            in_specs=[
                pl.BlockSpec((G, H * W), lambda g: (g, 0)),      # x (Bt images)
                pl.BlockSpec((H * W, Npad), lambda g: (0, 0)),   # upsample matrix
                pl.BlockSpec((G, 9 * G), lambda g: (0, 0)),      # conv1 stacked taps
                pl.BlockSpec((G, 1), lambda g: (0, 0)),          # s1
                pl.BlockSpec((G, 1), lambda g: (0, 0)),          # b1
                pl.BlockSpec((G, 9 * G), lambda g: (0, 0)),      # conv2 stacked taps
                pl.BlockSpec((G, 1), lambda g: (0, 0)),          # s2
                pl.BlockSpec((G, 1), lambda g: (0, 0)),          # b2
                pl.BlockSpec((1, Lp), lambda g: (0, 0)),         # interior-lane mask
            ],
            out_specs=pl.BlockSpec((G, Lp), lambda g: (g, 0)),
            scratch_shapes=[pltpu.VMEM((G, Npad), jnp.float32),      # flat padded slab
                            pltpu.VMEM((9 * G, Lp), jnp.float32)],   # im2col stack
        ),
        compiler_params=pltpu.CompilerParams(
            dimension_semantics=("parallel",)),   # image blocks are independent
    )(x_flat, up_mat, w1s, s1_t, b1_t, w2s, s2_t, b2_t, mask)

    # Crop the 2 carried pad columns per row and restore (B, C, 2H, 2W).
    return out_flat.reshape(B, C, Hu, Wp)[:, :, :, :Wu]


# ---------------------------------------------------------------------------
# Synthetic parameters and pure-JAX reference.
# ---------------------------------------------------------------------------
def init_params(key, c):
    """Deterministic synthetic parameters; conv bias + eval-mode BN folded to (scale, bias)."""
    ks = jax.random.split(key, 4)
    w1 = 0.1 * jax.random.normal(ks[0], (c, c, 3, 3), jnp.float32)
    w2 = 0.1 * jax.random.normal(ks[1], (c, c, 3, 3), jnp.float32)

    def bn_fold(k, ch):
        kg, kb, km, kv, kc = jax.random.split(k, 5)
        gamma = 1.0 + 0.1 * jax.random.normal(kg, (ch,), jnp.float32)
        beta = 0.1 * jax.random.normal(kb, (ch,), jnp.float32)
        mean = 0.1 * jax.random.normal(km, (ch,), jnp.float32)
        var = jax.random.uniform(kv, (ch,), jnp.float32, minval=0.5, maxval=1.5)
        conv_bias = 0.1 * jax.random.normal(kc, (ch,), jnp.float32)
        scale = gamma / jnp.sqrt(var + 1e-5)
        bias = beta + (conv_bias - mean) * scale
        return scale, bias

    s1, b1 = bn_fold(ks[2], c)
    s2, b2 = bn_fold(ks[3], c)
    return (w1, s1, b1, w2, s2, b2)


def ref_forward(x, params):
    """Pure-JAX reference: bilinear 2x upsample (align_corners=False) + double_conv."""
    w1, s1, b1, w2, s2, b2 = params
    B, C, H, W = x.shape

    def iw(n):
        i = jnp.arange(2 * n)
        src = jnp.clip((i.astype(jnp.float32) + 0.5) / 2.0 - 0.5, 0.0, None)
        i0 = jnp.clip(jnp.floor(src).astype(jnp.int32), 0, n - 1)
        i1 = jnp.clip(i0 + 1, 0, n - 1)
        f = src - i0.astype(jnp.float32)
        return i0, i1, f

    r0, r1, fr = iw(H)
    c0, c1, fc = iw(W)
    xh = x[:, :, r0, :] * (1.0 - fr)[None, None, :, None] + \
         x[:, :, r1, :] * fr[None, None, :, None]
    y = xh[:, :, :, c0] * (1.0 - fc) + xh[:, :, :, c1] * fc        # (B, C, 2H, 2W)

    dn = ('NCHW', 'OIHW', 'NCHW')
    y = lax.conv_general_dilated(y, w1, (1, 1), ((1, 1), (1, 1)),
                                 dimension_numbers=dn, precision=lax.Precision.HIGHEST)
    y = jnp.maximum(y * s1[None, :, None, None] + b1[None, :, None, None], 0.0)
    y = lax.conv_general_dilated(y, w2, (1, 1), ((1, 1), (1, 1)),
                                 dimension_numbers=dn, precision=lax.Precision.HIGHEST)
    y = jnp.maximum(y * s2[None, :, None, None] + b2[None, :, None, None], 0.0)
    return y


if __name__ == "__main__":
    # last_up(in_ch=4) on a (2, 4, 16, 16) input -> (2, 4, 32, 32) output.
    B, C, H, W = 2, 4, 16, 16

    key = jax.random.PRNGKey(0)
    kx, kp = jax.random.split(key)
    x = jax.random.normal(kx, (B, C, H, W), jnp.float32)           # NCHW like PyTorch
    params = init_params(kp, C)

    out = last_up_pallas(x, params)
    out = jax.block_until_ready(out)

    ref = ref_forward(x, params)
    assert out.shape == ref.shape == (B, C, 2 * H, 2 * W), (out.shape, ref.shape)
    max_err = float(jnp.max(jnp.abs(out - ref)))
    assert jnp.allclose(out, ref, atol=2e-3, rtol=2e-3), f"max_err={max_err}"
    print("KERNEL_OK")
</pallas_src>

<mosaic_0001>
module attributes {stable_mosaic.version = 11 : i64} {
  func.func @_last_up_kernel(%arg0: i32, %arg1: memref<8x256xf32, #tpu.memory_space<vmem>>, %arg2: memref<256x1280xf32, #tpu.memory_space<vmem>>, %arg3: memref<8x72xf32, #tpu.memory_space<vmem>>, %arg4: memref<8x1xf32, #tpu.memory_space<vmem>>, %arg5: memref<8x1xf32, #tpu.memory_space<vmem>>, %arg6: memref<8x72xf32, #tpu.memory_space<vmem>>, %arg7: memref<8x1xf32, #tpu.memory_space<vmem>>, %arg8: memref<8x1xf32, #tpu.memory_space<vmem>>, %arg9: memref<1x1088xf32, #tpu.memory_space<vmem>>, %arg10: memref<8x1088xf32, #tpu.memory_space<vmem>>, %arg11: memref<8x1280xf32, #tpu.memory_space<vmem>>, %arg12: memref<72x1088xf32, #tpu.memory_space<vmem>>) attributes {dimension_semantics = [#tpu.dimension_semantics<parallel>], iteration_bounds = array<i64: 1>, scalar_prefetch = 0 : i64, scratch_operands = 2 : i64, tpu.core_type = #tpu.core_type<tc>, window_params = [{transform_indices = @transform_0, window_bounds = array<i64: 8, 256>}, {pipeline_mode = #tpu.pipeline_mode<synchronous>, transform_indices = @transform_1, window_bounds = array<i64: 256, 1280>}, {pipeline_mode = #tpu.pipeline_mode<synchronous>, transform_indices = @transform_2, window_bounds = array<i64: 8, 72>}, {pipeline_mode = #tpu.pipeline_mode<synchronous>, transform_indices = @transform_3, window_bounds = array<i64: 8, 1>}, {pipeline_mode = #tpu.pipeline_mode<synchronous>, transform_indices = @transform_4, window_bounds = array<i64: 8, 1>}, {pipeline_mode = #tpu.pipeline_mode<synchronous>, transform_indices = @transform_5, window_bounds = array<i64: 8, 72>}, {pipeline_mode = #tpu.pipeline_mode<synchronous>, transform_indices = @transform_6, window_bounds = array<i64: 8, 1>}, {pipeline_mode = #tpu.pipeline_mode<synchronous>, transform_indices = @transform_7, window_bounds = array<i64: 8, 1>}, {pipeline_mode = #tpu.pipeline_mode<synchronous>, transform_indices = @transform_8, window_bounds = array<i64: 1, 1088>}, {transform_indices = @transform_9, window_bounds = array<i64: 8, 1088>}]} {
    %c0 = arith.constant 0 : index
    %c0_0 = arith.constant 0 : index
    %0 = vector.load %arg1[%c0, %c0_0] : memref<8x256xf32, #tpu.memory_space<vmem>>, vector<8x256xf32>
    %c0_1 = arith.constant 0 : index
    %c0_2 = arith.constant 0 : index
    %1 = vector.load %arg2[%c0_1, %c0_2] : memref<256x1280xf32, #tpu.memory_space<vmem>>, vector<256x1280xf32>
    %cst = arith.constant dense<0.000000e+00> : vector<8x1280xf32>
    %2 = tpu.matmul %0, %1, %cst {dimension_numbers = #tpu.dot_dimension_numbers<[1], [0], [0], [1], [0, 0, 1, 1], [], []>} : vector<8x256xf32>, vector<256x1280xf32>, vector<8x1280xf32> -> vector<8x1280xf32>
    %c0_3 = arith.constant 0 : index
    %c0_4 = arith.constant 0 : index
    %3 = vector.load %arg11[%c0_3, %c0_4] : memref<8x1280xf32, #tpu.memory_space<vmem>>, vector<8x1280xf32>
    tpu.vector_store %arg11[%c0_3, %c0_4], %2 {strides = array<i32>} : memref<8x1280xf32, #tpu.memory_space<vmem>>, vector<8x1280xf32>,
    %c0_5 = arith.constant 0 : index
    %c93 = arith.constant 93 : index
    %4 = vector.load %arg11[%c0_5, %c93] : memref<8x1280xf32, #tpu.memory_space<vmem>>, vector<8x1088xf32>
    %c0_6 = arith.constant 0 : index
    %c0_7 = arith.constant 0 : index
    %5 = vector.load %arg12[%c0_6, %c0_7] : memref<72x1088xf32, #tpu.memory_space<vmem>>, vector<8x1088xf32>
    tpu.vector_store %arg12[%c0_6, %c0_7], %4 {strides = array<i32>} : memref<72x1088xf32, #tpu.memory_space<vmem>>, vector<8x1088xf32>,
    %c0_8 = arith.constant 0 : index
    %c94 = arith.constant 94 : index
    %6 = vector.load %arg11[%c0_8, %c94] : memref<8x1280xf32, #tpu.memory_space<vmem>>, vector<8x1088xf32>
    %c8 = arith.constant 8 : index
    %c0_9 = arith.constant 0 : index
    %7 = vector.load %arg12[%c8, %c0_9] : memref<72x1088xf32, #tpu.memory_space<vmem>>, vector<8x1088xf32>
    tpu.vector_store %arg12[%c8, %c0_9], %6 {strides = array<i32>} : memref<72x1088xf32, #tpu.memory_space<vmem>>, vector<8x1088xf32>,
    %c0_10 = arith.constant 0 : index
    %c95 = arith.constant 95 : index
    %8 = vector.load %arg11[%c0_10, %c95] : memref<8x1280xf32, #tpu.memory_space<vmem>>, vector<8x1088xf32>
    %c16 = arith.constant 16 : index
    %c0_11 = arith.constant 0 : index
    %9 = vector.load %arg12[%c16, %c0_11] : memref<72x1088xf32, #tpu.memory_space<vmem>>, vector<8x1088xf32>
    tpu.vector_store %arg12[%c16, %c0_11], %8 {strides = array<i32>} : memref<72x1088xf32, #tpu.memory_space<vmem>>, vector<8x1088xf32>,
    %c0_12 = arith.constant 0 : index
    %c127 = arith.constant 127 : index
    %10 = vector.load %arg11[%c0_12, %c127] : memref<8x1280xf32, #tpu.memory_space<vmem>>, vector<8x1088xf32>
    %c24 = arith.constant 24 : index
    %c0_13 = arith.constant 0 : index
    %11 = vector.load %arg12[%c24, %c0_13] : memref<72x1088xf32, #tpu.memory_space<vmem>>, vector<8x1088xf32>
    tpu.vector_store %arg12[%c24, %c0_13], %10 {strides = array<i32>} : memref<72x1088xf32, #tpu.memory_space<vmem>>, vector<8x1088xf32>,
    %c0_14 = arith.constant 0 : index
    %c128 = arith.constant 128 : index
    %12 = vector.load %arg11[%c0_14, %c128] : memref<8x1280xf32, #tpu.memory_space<vmem>>, vector<8x1088xf32>
    %c32 = arith.constant 32 : index
    %c0_15 = arith.constant 0 : index
    %13 = vector.load %arg12[%c32, %c0_15] : memref<72x1088xf32, #tpu.memory_space<vmem>>, vector<8x1088xf32>
    tpu.vector_store %arg12[%c32, %c0_15], %12 {strides = array<i32>} : memref<72x1088xf32, #tpu.memory_space<vmem>>, vector<8x1088xf32>,
    %c0_16 = arith.constant 0 : index
    %c129 = arith.constant 129 : index
    %14 = vector.load %arg11[%c0_16, %c129] : memref<8x1280xf32, #tpu.memory_space<vmem>>, vector<8x1088xf32>
    %c40 = arith.constant 40 : index
    %c0_17 = arith.constant 0 : index
    %15 = vector.load %arg12[%c40, %c0_17] : memref<72x1088xf32, #tpu.memory_space<vmem>>, vector<8x1088xf32>
    tpu.vector_store %arg12[%c40, %c0_17], %14 {strides = array<i32>} : memref<72x1088xf32, #tpu.memory_space<vmem>>, vector<8x1088xf32>,
    %c0_18 = arith.constant 0 : index
    %c161 = arith.constant 161 : index
    %16 = vector.load %arg11[%c0_18, %c161] : memref<8x1280xf32, #tpu.memory_space<vmem>>, vector<8x1088xf32>
    %c48 = arith.constant 48 : index
    %c0_19 = arith.constant 0 : index
    %17 = vector.load %arg12[%c48, %c0_19] : memref<72x1088xf32, #tpu.memory_space<vmem>>, vector<8x1088xf32>
    tpu.vector_store %arg12[%c48, %c0_19], %16 {strides = array<i32>} : memref<72x1088xf32, #tpu.memory_space<vmem>>, vector<8x1088xf32>,
    %c0_20 = arith.constant 0 : index
    %c162 = arith.constant 162 : index
    %18 = vector.load %arg11[%c0_20, %c162] : memref<8x1280xf32, #tpu.memory_space<vmem>>, vector<8x1088xf32>
    %c56 = arith.constant 56 : index
    %c0_21 = arith.constant 0 : index
    %19 = vector.load %arg12[%c56, %c0_21] : memref<72x1088xf32, #tpu.memory_space<vmem>>, vector<8x1088xf32>
    tpu.vector_store %arg12[%c56, %c0_21], %18 {strides = array<i32>} : memref<72x1088xf32, #tpu.memory_space<vmem>>, vector<8x1088xf32>,
    %c0_22 = arith.constant 0 : index
    %c163 = arith.constant 163 : index
    %20 = vector.load %arg11[%c0_22, %c163] : memref<8x1280xf32, #tpu.memory_space<vmem>>, vector<8x1088xf32>
    %c64 = arith.constant 64 : index
    %c0_23 = arith.constant 0 : index
    %21 = vector.load %arg12[%c64, %c0_23] : memref<72x1088xf32, #tpu.memory_space<vmem>>, vector<8x1088xf32>
    tpu.vector_store %arg12[%c64, %c0_23], %20 {strides = array<i32>} : memref<72x1088xf32, #tpu.memory_space<vmem>>, vector<8x1088xf32>,
    %c0_24 = arith.constant 0 : index
    %c0_25 = arith.constant 0 : index
    %22 = vector.load %arg3[%c0_24, %c0_25] : memref<8x72xf32, #tpu.memory_space<vmem>>, vector<8x72xf32>
    %c0_26 = arith.constant 0 : index
    %c0_27 = arith.constant 0 : index
    %23 = vector.load %arg12[%c0_26, %c0_27] : memref<72x1088xf32, #tpu.memory_space<vmem>>, vector<72x1088xf32>
    %cst_28 = arith.constant dense<0.000000e+00> : vector<8x1088xf32>
    %24 = tpu.matmul %22, %23, %cst_28 {dimension_numbers = #tpu.dot_dimension_numbers<[1], [0], [0], [1], [0, 0, 1, 1], [], []>} : vector<8x72xf32>, vector<72x1088xf32>, vector<8x1088xf32> -> vector<8x1088xf32>
    %c0_29 = arith.constant 0 : index
    %c0_30 = arith.constant 0 : index
    %25 = vector.load %arg4[%c0_29, %c0_30] : memref<8x1xf32, #tpu.memory_space<vmem>>, vector<8x1xf32>
    %26 = vector.broadcast %25 : vector<8x1xf32> to vector<8x1088xf32>
    %27 = arith.mulf %24, %26 : vector<8x1088xf32>
    %c0_31 = arith.constant 0 : index
    %c0_32 = arith.constant 0 : index
    %28 = vector.load %arg5[%c0_31, %c0_32] : memref<8x1xf32, #tpu.memory_space<vmem>>, vector<8x1xf32>
    %29 = vector.broadcast %28 : vector<8x1xf32> to vector<8x1088xf32>
    %30 = arith.addf %27, %29 : vector<8x1088xf32>
    %cst_33 = arith.constant 0.000000e+00 : f32
    %31 = vector.broadcast %cst_33 : f32 to vector<8x1088xf32>
    %32 = arith.maximumf %30, %31 : vector<8x1088xf32>
    %c0_34 = arith.constant 0 : index
    %c0_35 = arith.constant 0 : index
    %33 = vector.load %arg9[%c0_34, %c0_35] : memref<1x1088xf32, #tpu.memory_space<vmem>>, vector<1x1088xf32>
    %34 = vector.broadcast %33 : vector<1x1088xf32> to vector<8x1088xf32>
    %35 = arith.mulf %32, %34 : vector<8x1088xf32>
    %c0_36 = arith.constant 0 : index
    %c128_37 = arith.constant 128 : index
    %36 = vector.load %arg11[%c0_36, %c128_37] : memref<8x1280xf32, #tpu.memory_space<vmem>>, vector<8x1088xf32>
    tpu.vector_store %arg11[%c0_36, %c128_37], %35 {strides = array<i32>} : memref<8x1280xf32, #tpu.memory_space<vmem>>, vector<8x1088xf32>,
    %c0_38 = arith.constant 0 : index
    %c93_39 = arith.constant 93 : index
    %37 = vector.load %arg11[%c0_38, %c93_39] : memref<8x1280xf32, #tpu.memory_space<vmem>>, vector<8x1088xf32>
    %c0_40 = arith.constant 0 : index
    %c0_41 = arith.constant 0 : index
    %38 = vector.load %arg12[%c0_40, %c0_41] : memref<72x1088xf32, #tpu.memory_space<vmem>>, vector<8x1088xf32>
    tpu.vector_store %arg12[%c0_40, %c0_41], %37 {strides = array<i32>} : memref<72x1088xf32, #tpu.memory_space<vmem>>, vector<8x1088xf32>,
    %c0_42 = arith.constant 0 : index
    %c94_43 = arith.constant 94 : index
    %39 = vector.load %arg11[%c0_42, %c94_43] : memref<8x1280xf32, #tpu.memory_space<vmem>>, vector<8x1088xf32>
    %c8_44 = arith.constant 8 : index
    %c0_45 = arith.constant 0 : index
    %40 = vector.load %arg12[%c8_44, %c0_45] : memref<72x1088xf32, #tpu.memory_space<vmem>>, vector<8x1088xf32>
    tpu.vector_store %arg12[%c8_44, %c0_45], %39 {strides = array<i32>} : memref<72x1088xf32, #tpu.memory_space<vmem>>, vector<8x1088xf32>,
    %c0_46 = arith.constant 0 : index
    %c95_47 = arith.constant 95 : index
    %41 = vector.load %arg11[%c0_46, %c95_47] : memref<8x1280xf32, #tpu.memory_space<vmem>>, vector<8x1088xf32>
    %c16_48 = arith.constant 16 : index
    %c0_49 = arith.constant 0 : index
    %42 = vector.load %arg12[%c16_48, %c0_49] : memref<72x1088xf32, #tpu.memory_space<vmem>>, vector<8x1088xf32>
    tpu.vector_store %arg12[%c16_48, %c0_49], %41 {strides = array<i32>} : memref<72x1088xf32, #tpu.memory_space<vmem>>, vector<8x1088xf32>,
    %c0_50 = arith.constant 0 : index
    %c127_51 = arith.constant 127 : index
    %43 = vector.load %arg11[%c0_50, %c127_51] : memref<8x1280xf32, #tpu.memory_space<vmem>>, vector<8x1088xf32>
    %c24_52 = arith.constant 24 : index
    %c0_53 = arith.constant 0 : index
    %44 = vector.load %arg12[%c24_52, %c0_53] : memref<72x1088xf32, #tpu.memory_space<vmem>>, vector<8x1088xf32>
    tpu.vector_store %arg12[%c24_52, %c0_53], %43 {strides = array<i32>} : memref<72x1088xf32, #tpu.memory_space<vmem>>, vector<8x1088xf32>,
    %c0_54 = arith.constant 0 : index
    %c128_55 = arith.constant 128 : index
    %45 = vector.load %arg11[%c0_54, %c128_55] : memref<8x1280xf32, #tpu.memory_space<vmem>>, vector<8x1088xf32>
    %c32_56 = arith.constant 32 : index
    %c0_57 = arith.constant 0 : index
    %46 = vector.load %arg12[%c32_56, %c0_57] : memref<72x1088xf32, #tpu.memory_space<vmem>>, vector<8x1088xf32>
    tpu.vector_store %arg12[%c32_56, %c0_57], %45 {strides = array<i32>} : memref<72x1088xf32, #tpu.memory_space<vmem>>, vector<8x1088xf32>,
    %c0_58 = arith.constant 0 : index
    %c129_59 = arith.constant 129 : index
    %47 = vector.load %arg11[%c0_58, %c129_59] : memref<8x1280xf32, #tpu.memory_space<vmem>>, vector<8x1088xf32>
    %c40_60 = arith.constant 40 : index
    %c0_61 = arith.constant 0 : index
    %48 = vector.load %arg12[%c40_60, %c0_61] : memref<72x1088xf32, #tpu.memory_space<vmem>>, vector<8x1088xf32>
    tpu.vector_store %arg12[%c40_60, %c0_61], %47 {strides = array<i32>} : memref<72x1088xf32, #tpu.memory_space<vmem>>, vector<8x1088xf32>,
    %c0_62 = arith.constant 0 : index
    %c161_63 = arith.constant 161 : index
    %49 = vector.load %arg11[%c0_62, %c161_63] : memref<8x1280xf32, #tpu.memory_space<vmem>>, vector<8x1088xf32>
    %c48_64 = arith.constant 48 : index
    %c0_65 = arith.constant 0 : index
    %50 = vector.load %arg12[%c48_64, %c0_65] : memref<72x1088xf32, #tpu.memory_space<vmem>>, vector<8x1088xf32>
    tpu.vector_store %arg12[%c48_64, %c0_65], %49 {strides = array<i32>} : memref<72x1088xf32, #tpu.memory_space<vmem>>, vector<8x1088xf32>,
    %c0_66 = arith.constant 0 : index
    %c162_67 = arith.constant 162 : index
    %51 = vector.load %arg11[%c0_66, %c162_67] : memref<8x1280xf32, #tpu.memory_space<vmem>>, vector<8x1088xf32>
    %c56_68 = arith.constant 56 : index
    %c0_69 = arith.constant 0 : index
    %52 = vector.load %arg12[%c56_68, %c0_69] : memref<72x1088xf32, #tpu.memory_space<vmem>>, vector<8x1088xf32>
    tpu.vector_store %arg12[%c56_68, %c0_69], %51 {strides = array<i32>} : memref<72x1088xf32, #tpu.memory_space<vmem>>, vector<8x1088xf32>,
    %c0_70 = arith.constant 0 : index
    %c163_71 = arith.constant 163 : index
    %53 = vector.load %arg11[%c0_70, %c163_71] : memref<8x1280xf32, #tpu.memory_space<vmem>>, vector<8x1088xf32>
    %c64_72 = arith.constant 64 : index
    %c0_73 = arith.constant 0 : index
    %54 = vector.load %arg12[%c64_72, %c0_73] : memref<72x1088xf32, #tpu.memory_space<vmem>>, vector<8x1088xf32>
    tpu.vector_store %arg12[%c64_72, %c0_73], %53 {strides = array<i32>} : memref<72x1088xf32, #tpu.memory_space<vmem>>, vector<8x1088xf32>,
    %c0_74 = arith.constant 0 : index
    %c0_75 = arith.constant 0 : index
    %55 = vector.load %arg6[%c0_74, %c0_75] : memref<8x72xf32, #tpu.memory_space<vmem>>, vector<8x72xf32>
    %c0_76 = arith.constant 0 : index
    %c0_77 = arith.constant 0 : index
    %56 = vector.load %arg12[%c0_76, %c0_77] : memref<72x1088xf32, #tpu.memory_space<vmem>>, vector<72x1088xf32>
    %cst_78 = arith.constant dense<0.000000e+00> : vector<8x1088xf32>
    %57 = tpu.matmul %55, %56, %cst_78 {dimension_numbers = #tpu.dot_dimension_numbers<[1], [0], [0], [1], [0, 0, 1, 1], [], []>} : vector<8x72xf32>, vector<72x1088xf32>, vector<8x1088xf32> -> vector<8x1088xf32>
    %c0_79 = arith.constant 0 : index
    %c0_80 = arith.constant 0 : index
    %58 = vector.load %arg7[%c0_79, %c0_80] : memref<8x1xf32, #tpu.memory_space<vmem>>, vector<8x1xf32>
    %59 = vector.broadcast %58 : vector<8x1xf32> to vector<8x1088xf32>
    %60 = arith.mulf %57, %59 : vector<8x1088xf32>
    %c0_81 = arith.constant 0 : index
    %c0_82 = arith.constant 0 : index
    %61 = vector.load %arg8[%c0_81, %c0_82] : memref<8x1xf32, #tpu.memory_space<vmem>>, vector<8x1xf32>
    %62 = vector.broadcast %61 : vector<8x1xf32> to vector<8x1088xf32>
    %63 = arith.addf %60, %62 : vector<8x1088xf32>
    %cst_83 = arith.constant 0.000000e+00 : f32
    %64 = vector.broadcast %cst_83 : f32 to vector<8x1088xf32>
    %65 = arith.maximumf %63, %64 : vector<8x1088xf32>
    %c0_84 = arith.constant 0 : index
    %c0_85 = arith.constant 0 : index
    %66 = vector.load %arg10[%c0_84, %c0_85] : memref<8x1088xf32, #tpu.memory_space<vmem>>, vector<8x1088xf32>
    tpu.vector_store %arg10[%c0_84, %c0_85], %65 {strides = array<i32>} : memref<8x1088xf32, #tpu.memory_space<vmem>>, vector<8x1088xf32>,
    return
  }
  func.func @transform_0(%arg0: i32) -> (i32, i32) {
    %c0_i32 = arith.constant 0 : i32
    %c0_i32_0 = arith.constant 0 : i32
    return %arg0, %c0_i32 : i32, i32
  }
  func.func @transform_1(%arg0: i32) -> (i32, i32) {
    %c0_i32 = arith.constant 0 : i32
    %c0_i32_0 = arith.constant 0 : i32
    %c0_i32_1 = arith.constant 0 : i32
    return %c0_i32, %c0_i32_0 : i32, i32
  }
  func.func @transform_2(%arg0: i32) -> (i32, i32) {
    %c0_i32 = arith.constant 0 : i32
    %c0_i32_0 = arith.constant 0 : i32
    %c0_i32_1 = arith.constant 0 : i32
    return %c0_i32, %c0_i32_0 : i32, i32
  }
  func.func @transform_3(%arg0: i32) -> (i32, i32) {
    %c0_i32 = arith.constant 0 : i32
    %c0_i32_0 = arith.constant 0 : i32
    %c0_i32_1 = arith.constant 0 : i32
    return %c0_i32, %c0_i32_0 : i32, i32
  }
  func.func @transform_4(%arg0: i32) -> (i32, i32) {
    %c0_i32 = arith.constant 0 : i32
    %c0_i32_0 = arith.constant 0 : i32
    %c0_i32_1 = arith.constant 0 : i32
    return %c0_i32, %c0_i32_0 : i32, i32
  }
  func.func @transform_5(%arg0: i32) -> (i32, i32) {
    %c0_i32 = arith.constant 0 : i32
    %c0_i32_0 = arith.constant 0 : i32
    %c0_i32_1 = arith.constant 0 : i32
    return %c0_i32, %c0_i32_0 : i32, i32
  }
  func.func @transform_6(%arg0: i32) -> (i32, i32) {
    %c0_i32 = arith.constant 0 : i32
    %c0_i32_0 = arith.constant 0 : i32
    %c0_i32_1 = arith.constant 0 : i32
    return %c0_i32, %c0_i32_0 : i32, i32
  }
  func.func @transform_7(%arg0: i32) -> (i32, i32) {
    %c0_i32 = arith.constant 0 : i32
    %c0_i32_0 = arith.constant 0 : i32
    %c0_i32_1 = arith.constant 0 : i32
    return %c0_i32, %c0_i32_0 : i32, i32
  }
  func.func @transform_8(%arg0: i32) -> (i32, i32) {
    %c0_i32 = arith.constant 0 : i32
    %c0_i32_0 = arith.constant 0 : i32
    %c0_i32_1 = arith.constant 0 : i32
    return %c0_i32, %c0_i32_0 : i32, i32
  }
  func.func @transform_9(%arg0: i32) -> (i32, i32) {
    %c0_i32 = arith.constant 0 : i32
    %c0_i32_0 = arith.constant 0 : i32
    return %arg0, %c0_i32 : i32, i32
  }
}

</mosaic_0001>

<llo_original>
// kernel: tpu_custom_call.1
$region0: #{tpu_custom_call.1}
  #allocation0 [shape = 'u32[]', space=smem, size = 0x4, offset = 0x4, fixed_abs, tag = 'smem constant byte address 0x4 - core index']
  #allocation1 [shape = 'u32[72,128]{1,0:T(1,128)}', space=vmem, size = 0x9000, scoped, tag = 'internal scratch']
  #allocation2 [shape = 'f32[8,1280]{1,0:T(8,128)}', space=vmem, size = 0xa000, scoped, tag = 'scratch operand']
  #allocation3 [shape = 'f32[72,1088]{1,0:T(8,128)}', space=vmem, size = 0x51000, scoped, tag = 'scratch operand']
  %s0 = inlined_call_operand.hbm [shape: f32[8,256], index: 0, kind: input, shape index: {}]
  %s1 = inlined_call_operand.hbm [shape: f32[256,1280], index: 1, kind: input, shape index: {}]
  %s2 = inlined_call_operand.hbm [shape: f32[8,72], index: 2, kind: input, shape index: {}]
  %s3 = inlined_call_operand.vmem [shape: f32[8,1], index: 3, kind: input, shape index: {}]
  %s4 = inlined_call_operand.vmem [shape: f32[8,1], index: 4, kind: input, shape index: {}]
  %s5 = inlined_call_operand.hbm [shape: f32[8,72], index: 5, kind: input, shape index: {}]
  %s6 = inlined_call_operand.vmem [shape: f32[8,1], index: 6, kind: input, shape index: {}]
  %s7 = inlined_call_operand.vmem [shape: f32[8,1], index: 7, kind: input, shape index: {}]
  %s8 = inlined_call_operand.hbm [shape: f32[1,1088], index: 8, kind: input, shape index: {}]
  %s9 = inlined_call_operand.hbm [shape: f32[8,1088], index: 9, kind: output, shape index: {}]
  %s10 = sld [smem:[#allocation0]]
  $region66: #{tpu_custom_call.1} parent=0
    _
  %s12 = ssub.s32 1, %s10
  %s13 = scalar_select 0, %s12, %s10
  $region1: #{tpu_custom_call.1} parent=0
    #allocation4 [shape = 'u8[8192]{0}', space=vmem, size = 0x2000, scoped, tag = 'input window, operand 0, single buffered']
    #allocation5 [shape = 's32[1]{0}', space=sflag, size = 0x4, scoped, tag = 'scoped memory for tpu_custom_call.1']
    #allocation6 [shape = 's32[1]{0}', space=sflag, size = 0x4, scoped, tag = 'scoped memory for tpu_custom_call.1']
    #allocation7 [shape = 'u8[1310720]{0}', space=vmem, size = 0x140000, scoped, tag = 'input window, operand 1, single buffered']
    #allocation8 [shape = 's32[1]{0}', space=sflag, size = 0x4, scoped, tag = 'scoped memory for tpu_custom_call.1']
    #allocation9 [shape = 'u8[4096]{0}', space=vmem, size = 0x1000, scoped, tag = 'input window, operand 2, single buffered']
    #allocation10 [shape = 'u8[4096]{0}', space=vmem, size = 0x1000, scoped, tag = 'input window, operand 5, single buffered']
    #allocation11 [shape = 's32[1]{0}', space=sflag, size = 0x4, scoped, tag = 'scoped memory for tpu_custom_call.1']
    #allocation12 [shape = 'u8[4608]{0}', space=vmem, size = 0x1400, scoped, tag = 'input window, operand 8, single buffered']
    #allocation13 [shape = 'u8[36864]{0}', space=vmem, size = 0x9000, scoped, tag = 'output window, operand 0, single buffered']
    %14 = vsyncpa [#allocation5], 0
    %15 = vsyncpa [#allocation8], 0
    %16 = vsyncpa [#allocation11], 0
    %17 = vsyncpa [#allocation6], 0
    // Predicated region
    $region2: #{tpu_custom_call.1} parent=1 // pred_check
      _
    $region3: #{tpu_custom_call.1} parent=1 // pred_check_branch
      %19 = sbr.rel (0) target = $region5
    $region4: #{tpu_custom_call.1} parent=1 // pred_region
      %21 = vsyncadd [#allocation5], 0
      %s23 = sshll.u32 %s0, 4
      %s24 = int_to_ptr.hbm [resolvable:$true] %s23
      %s25 = sshll.u32 [#allocation4], 4
      %s26 = int_to_ptr.vmem [resolvable:$true] %s25
      %28 = dma.hbm_to_vmem [thread:$0]  %s24, 256, %s26, [#allocation5]
    $region5: #{tpu_custom_call.1} parent=1 // pred_fallthru
      _
    // Predicated region
    $region6: #{tpu_custom_call.1} parent=1 // pred_check
      _
    $region7: #{tpu_custom_call.1} parent=1 // pred_check_branch
      %30 = sbr.rel (0) target = $region9
    $region8: #{tpu_custom_call.1} parent=1 // pred_region
      %32 = vsyncadd [#allocation8], 0
      %s33 = sshll.u32 %s1, 4
      %s34 = int_to_ptr.hbm [resolvable:$true] %s33
      %s35 = sshll.u32 [#allocation7], 4
      %s36 = int_to_ptr.vmem [resolvable:$true] %s35
      %41 = dma.hbm_to_vmem [thread:$0]  %s34, 40960, %s36, [#allocation8], 1280, 1280, 80
    $region9: #{tpu_custom_call.1} parent=1 // pred_fallthru
      _
    // Predicated region
    $region10: #{tpu_custom_call.1} parent=1 // pred_check
      _
    $region11: #{tpu_custom_call.1} parent=1 // pred_check_branch
      %43 = sbr.rel (0) target = $region13
    $region12: #{tpu_custom_call.1} parent=1 // pred_region
      %45 = vsyncadd [#allocation8], 0
      %s47 = sshll.u32 %s2, 4
      %s48 = int_to_ptr.hbm [resolvable:$true] %s47
      %s49 = sshll.u32 [#allocation9], 4
      %s50 = int_to_ptr.vmem [resolvable:$true] %s49
      %52 = dma.hbm_to_vmem [thread:$0]  %s48, 128, %s50, [#allocation8]
    $region13: #{tpu_custom_call.1} parent=1 // pred_fallthru
      _
    // Predicated region
    $region14: #{tpu_custom_call.1} parent=1 // pred_check
      _
    $region15: #{tpu_custom_call.1} parent=1 // pred_check_branch
      %54 = sbr.rel (0) target = $region17
    $region16: #{tpu_custom_call.1} parent=1 // pred_region
      _
    $region17: #{tpu_custom_call.1} parent=1 // pred_fallthru
      _
    // Predicated region
    $region18: #{tpu_custom_call.1} parent=1 // pred_check
      _
    $region19: #{tpu_custom_call.1} parent=1 // pred_check_branch
      %56 = sbr.rel (0) target = $region21
    $region20: #{tpu_custom_call.1} parent=1 // pred_region
      _
    $region21: #{tpu_custom_call.1} parent=1 // pred_fallthru
      _
    // Predicated region
    $region22: #{tpu_custom_call.1} parent=1 // pred_check
      _
    $region23: #{tpu_custom_call.1} parent=1 // pred_check_branch
      %58 = sbr.rel (0) target = $region25
    $region24: #{tpu_custom_call.1} parent=1 // pred_region
      %60 = vsyncadd [#allocation11], 0
      %s62 = sshll.u32 %s5, 4
      %s63 = int_to_ptr.hbm [resolvable:$true] %s62
      %s64 = sshll.u32 [#allocation10], 4
      %s65 = int_to_ptr.vmem [resolvable:$true] %s64
      %67 = dma.hbm_to_vmem [thread:$0]  %s63, 128, %s65, [#allocation11]
    $region25: #{tpu_custom_call.1} parent=1 // pred_fallthru
      _
    // Predicated region
    $region26: #{tpu_custom_call.1} parent=1 // pred_check
      _
    $region27: #{tpu_custom_call.1} parent=1 // pred_check_branch
      %69 = sbr.rel (0) target = $region29
    $region28: #{tpu_custom_call.1} parent=1 // pred_region
      _
    $region29: #{tpu_custom_call.1} parent=1 // pred_fallthru
      _
    // Predicated region
    $region30: #{tpu_custom_call.1} parent=1 // pred_check
      _
    $region31: #{tpu_custom_call.1} parent=1 // pred_check_branch
      %71 = sbr.rel (0) target = $region33
    $region32: #{tpu_custom_call.1} parent=1 // pred_region
      _
    $region33: #{tpu_custom_call.1} parent=1 // pred_fallthru
      _
    // Predicated region
    $region34: #{tpu_custom_call.1} parent=1 // pred_check
      _
    $region35: #{tpu_custom_call.1} parent=1 // pred_check_branch
      %73 = sbr.rel (0) target = $region37
    $region36: #{tpu_custom_call.1} parent=1 // pred_region
      %75 = vsyncadd [#allocation11], 0
      %s77 = sshll.u32 %s8, 4
      %s78 = int_to_ptr.hbm [resolvable:$true] %s77
      %s79 = sshll.u32 [#allocation12], 4
      %s80 = int_to_ptr.vmem [resolvable:$true] %s79
      %82 = dma.hbm_to_vmem [thread:$0]  %s78, 144, %s80, [#allocation11]
    $region37: #{tpu_custom_call.1} parent=1 // pred_fallthru
      _
    // Predicated region
    $region38: #{tpu_custom_call.1} parent=1 // pred_check
      _
    $region39: #{tpu_custom_call.1} parent=1 // pred_check_branch
      %84 = sbr.rel (0) target = $region41
    $region40: #{tpu_custom_call.1} parent=1 // pred_region
      %86 = dma.done [#allocation5], 256
    $region41: #{tpu_custom_call.1} parent=1 // pred_fallthru
      _
    // Predicated region
    $region42: #{tpu_custom_call.1} parent=1 // pred_check
      _
    $region43: #{tpu_custom_call.1} parent=1 // pred_check_branch
      %88 = sbr.rel (0) target = $region45
    $region44: #{tpu_custom_call.1} parent=1 // pred_region
      %90 = dma.done [#allocation8], 40960
    $region45: #{tpu_custom_call.1} parent=1 // pred_fallthru
      _
    // Predicated region
    $region46: #{tpu_custom_call.1} parent=1 // pred_check
      _
    $region47: #{tpu_custom_call.1} parent=1 // pred_check_branch
      %92 = sbr.rel (0) target = $region49
    $region48: #{tpu_custom_call.1} parent=1 // pred_region
      %94 = dma.done [#allocation8], 128
    $region49: #{tpu_custom_call.1} parent=1 // pred_fallthru
      _
    // Predicated region
    $region50: #{tpu_custom_call.1} parent=1 // pred_check
      _
    $region51: #{tpu_custom_call.1} parent=1 // pred_check_branch
      %96 = sbr.rel (0) target = $region53
    $region52: #{tpu_custom_call.1} parent=1 // pred_region
      %98 = dma.done [#allocation11], 128
    $region53: #{tpu_custom_call.1} parent=1 // pred_fallthru
      _
    // Predicated region
    $region54: #{tpu_custom_call.1} parent=1 // pred_check
      _
    $region55: #{tpu_custom_call.1} parent=1 // pred_check_branch
      %100 = sbr.rel (0) target = $region57
    $region56: #{tpu_custom_call.1} parent=1 // pred_region
      %102 = dma.done [#allocation11], 144
    $region57: #{tpu_custom_call.1} parent=1 // pred_fallthru
      _
    %v103 = vld [vmem:[#allocation4] sm:$0xff]
    %v104 = vld [vmem:[#allocation4 + $0x8] sm:$0xff]
    %v105 = vld [vmem:[#allocation7] sm:$0xff]
    %v106 = vld [vmem:[#allocation7 + $0x8] sm:$0xff]
    %v107 = vld [vmem:[#allocation7 + $0x10] sm:$0xff]
    %v108 = vld [vmem:[#allocation7 + $0x18] sm:$0xff]
    %v109 = vld [vmem:[#allocation7 + $0x20] sm:$0xff]
    %v110 = vld [vmem:[#allocation7 + $0x28] sm:$0xff]
    %v111 = vld [vmem:[#allocation7 + $0x30] sm:$0xff]
    %v112 = vld [vmem:[#allocation7 + $0x38] sm:$0xff]
    %v113 = vld [vmem:[#allocation7 + $0x40] sm:$0xff]
    %v114 = vld [vmem:[#allocation7 + $0x48] sm:$0xff]
    %v115 = vld [vmem:[#allocation7 + $0x50] sm:$0xff]
    %v116 = vld [vmem:[#allocation7 + $0x58] sm:$0xff]
    %v117 = vld [vmem:[#allocation7 + $0x60] sm:$0xff]
    %v118 = vld [vmem:[#allocation7 + $0x68] sm:$0xff]
    %v119 = vld [vmem:[#allocation7 + $0x70] sm:$0xff]
    %v120 = vld [vmem:[#allocation7 + $0x78] sm:$0xff]
    %v121 = vld [vmem:[#allocation7 + $0x80] sm:$0xff]
    %v122 = vld [vmem:[#allocation7 + $0x88] sm:$0xff]
    %v123 = vld [vmem:[#allocation7 + $0x90] sm:$0xff]
    %v124 = vld [vmem:[#allocation7 + $0x98] sm:$0xff]
    %v125 = vld [vmem:[#allocation7 + $0xa0] sm:$0xff]
    %v126 = vld [vmem:[#allocation7 + $0xa8] sm:$0xff]
    %v127 = vld [vmem:[#allocation7 + $0xb0] sm:$0xff]
    %v128 = vld [vmem:[#allocation7 + $0xb8] sm:$0xff]
    %v129 = vld [vmem:[#allocation7 + $0xc0] sm:$0xff]
    %v130 = vld [vmem:[#allocation7 + $0xc8] sm:$0xff]
    %v131 = vld [vmem:[#allocation7 + $0xd0] sm:$0xff]
    %v132 = vld [vmem:[#allocation7 + $0xd8] sm:$0xff]
    %v133 = vld [vmem:[#allocation7 + $0xe0] sm:$0xff]
    %v134 = vld [vmem:[#allocation7 + $0xe8] sm:$0xff]
    %v135 = vld [vmem:[#allocation7 + $0xf0] sm:$0xff]
    %v136 = vld [vmem:[#allocation7 + $0xf8] sm:$0xff]
    %v137 = vld [vmem:[#allocation7 + $0x100] sm:$0xff]
    %v138 = vld [vmem:[#allocation7 + $0x108] sm:$0xff]
    %v139 = vld [vmem:[#allocation7 + $0x110] sm:$0xff]
    %v140 = vld [vmem:[#allocation7 + $0x118] sm:$0xff]
    %v141 = vld [vmem:[#allocation7 + $0x120] sm:$0xff]
    %v142 = vld [vmem:[#allocation7 + $0x128] sm:$0xff]
    %v143 = vld [vmem:[#allocation7 + $0x130] sm:$0xff]
    %v144 = vld [vmem:[#allocation7 + $0x138] sm:$0xff]
    %v145 = vld [vmem:[#allocation7 + $0x140] sm:$0xff]
    %v146 = vld [vmem:[#allocation7 + $0x148] sm:$0xff]
    %v147 = vld [vmem:[#allocation7 + $0x150] sm:$0xff]
    %v148 = vld [vmem:[#allocation7 + $0x158] sm:$0xff]
    %v149 = vld [vmem:[#allocation7 + $0x160] sm:$0xff]
    %v150 = vld [vmem:[#allocation7 + $0x168] sm:$0xff]
    %v151 = vld [vmem:[#allocation7 + $0x170] sm:$0xff]
    %v152 = vld [vmem:[#allocation7 + $0x178] sm:$0xff]
    %v153 = vld [vmem:[#allocation7 + $0x180] sm:$0xff]
    %v154 = vld [vmem:[#allocation7 + $0x188] sm:$0xff]
    %v155 = vld [vmem:[#allocation7 + $0x190] sm:$0xff]
    %v156 = vld [vmem:[#allocation7 + $0x198] sm:$0xff]
    %v157 = vld [vmem:[#allocation7 + $0x1a0] sm:$0xff]
    %v158 = vld [vmem:[#allocation7 + $0x1a8] sm:$0xff]
    %v159 = vld [vmem:[#allocation7 + $0x1b0] sm:$0xff]
    %v160 = vld [vmem:[#allocation7 + $0x1b8] sm:$0xff]
    %v161 = vld [vmem:[#allocation7 + $0x1c0] sm:$0xff]
    %v162 = vld [vmem:[#allocation7 + $0x1c8] sm:$0xff]
    %v163 = vld [vmem:[#allocation7 + $0x1d0] sm:$0xff]
    %v164 = vld [vmem:[#allocation7 + $0x1d8] sm:$0xff]
    %v165 = vld [vmem:[#allocation7 + $0x1e0] sm:$0xff]
    %v166 = vld [vmem:[#allocation7 + $0x1e8] sm:$0xff]
    %v167 = vld [vmem:[#allocation7 + $0x1f0] sm:$0xff]
    %v168 = vld [vmem:[#allocation7 + $0x1f8] sm:$0xff]
    %v169 = vld [vmem:[#allocation7 + $0x200] sm:$0xff]
    %v170 = vld [vmem:[#allocation7 + $0x208] sm:$0xff]
    %v171 = vld [vmem:[#allocation7 + $0x210] sm:$0xff]
    %v172 = vld [vmem:[#allocation7 + $0x218] sm:$0xff]
    %v173 = vld [vmem:[#allocation7 + $0x220] sm:$0xff]
    %v174 = vld [vmem:[#allocation7 + $0x228] sm:$0xff]
    %v175 = vld [vmem:[#allocation7 + $0x230] sm:$0xff]
    %v176 = vld [vmem:[#allocation7 + $0x238] sm:$0xff]
    %v177 = vld [vmem:[#allocation7 + $0x240] sm:$0xff]
    %v178 = vld [vmem:[#allocation7 + $0x248] sm:$0xff]
    %v179 = vld [vmem:[#allocation7 + $0x250] sm:$0xff]
    %v180 = vld [vmem:[#allocation7 + $0x258] sm:$0xff]
    %v181 = vld [vmem:[#allocation7 + $0x260] sm:$0xff]
    %v182 = vld [vmem:[#allocation7 + $0x268] sm:$0xff]
    %v183 = vld [vmem:[#allocation7 + $0x270] sm:$0xff]
    %v184 = vld [vmem:[#allocation7 + $0x278] sm:$0xff]
    %v185 = vld [vmem:[#allocation7 + $0x280] sm:$0xff]
    %v186 = vld [vmem:[#allocation7 + $0x288] sm:$0xff]
    %v187 = vld [vmem:[#allocation7 + $0x290] sm:$0xff]
    %v188 = vld [vmem:[#allocation7 + $0x298] sm:$0xff]
    %v189 = vld [vmem:[#allocation7 + $0x2a0] sm:$0xff]
    %v190 = vld [vmem:[#allocation7 + $0x2a8] sm:$0xff]
    %v191 = vld [vmem:[#allocation7 + $0x2b0] sm:$0xff]
    %v192 = vld [vmem:[#allocation7 + $0x2b8] sm:$0xff]
    %v193 = vld [vmem:[#allocation7 + $0x2c0] sm:$0xff]
    %v194 = vld [vmem:[#allocation7 + $0x2c8] sm:$0xff]
    %v195 = vld [vmem:[#allocation7 + $0x2d0] sm:$0xff]
    %v196 = vld [vmem:[#allocation7 + $0x2d8] sm:$0xff]
    %v197 = vld [vmem:[#allocation7 + $0x2e0] sm:$0xff]
    %v198 = vld [vmem:[#allocation7 + $0x2e8] sm:$0xff]
    %v199 = vld [vmem:[#allocation7 + $0x2f0] sm:$0xff]
    %v200 = vld [vmem:[#allocation7 + $0x2f8] sm:$0xff]
    %v201 = vld [vmem:[#allocation7 + $0x300] sm:$0xff]
    %v202 = vld [vmem:[#allocation7 + $0x308] sm:$0xff]
    %v203 = vld [vmem:[#allocation7 + $0x310] sm:$0xff]
    %v204 = vld [vmem:[#allocation7 + $0x318] sm:$0xff]
    %v205 = vld [vmem:[#allocation7 + $0x320] sm:$0xff]
    %v206 = vld [vmem:[#allocation7 + $0x328] sm:$0xff]
    %v207 = vld [vmem:[#allocation7 + $0x330] sm:$0xff]
    %v208 = vld [vmem:[#allocation7 + $0x338] sm:$0xff]
    %v209 = vld [vmem:[#allocation7 + $0x340] sm:$0xff]
    %v210 = vld [vmem:[#allocation7 + $0x348] sm:$0xff]
    %v211 = vld [vmem:[#allocation7 + $0x350] sm:$0xff]
    %v212 = vld [vmem:[#allocation7 + $0x358] sm:$0xff]
    %v213 = vld [vmem:[#allocation7 + $0x360] sm:$0xff]
    %v214 = vld [vmem:[#allocation7 + $0x368] sm:$0xff]
    %v215 = vld [vmem:[#allocation7 + $0x370] sm:$0xff]
    %v216 = vld [vmem:[#allocation7 + $0x378] sm:$0xff]
    %v217 = vld [vmem:[#allocation7 + $0x380] sm:$0xff]
    %v218 = vld [vmem:[#allocation7 + $0x388] sm:$0xff]
    %v219 = vld [vmem:[#allocation7 + $0x390] sm:$0xff]
    %v220 = vld [vmem:[#allocation7 + $0x398] sm:$0xff]
    %v221 = vld [vmem:[#allocation7 + $0x3a0] sm:$0xff]
    %v222 = vld [vmem:[#allocation7 + $0x3a8] sm:$0xff]
    %v223 = vld [vmem:[#allocation7 + $0x3b0] sm:$0xff]
    %v224 = vld [vmem:[#allocation7 + $0x3b8] sm:$0xff]
    %v225 = vld [vmem:[#allocation7 + $0x3c0] sm:$0xff]
    %v226 = vld [vmem:[#allocation7 + $0x3c8] sm:$0xff]
    %v227 = vld [vmem:[#allocation7 + $0x3d0] sm:$0xff]
    %v228 = vld [vmem:[#allocation7 + $0x3d8] sm:$0xff]
    %v229 = vld [vmem:[#allocation7 + $0x3e0] sm:$0xff]
    %v230 = vld [vmem:[#allocation7 + $0x3e8] sm:$0xff]
    %v231 = vld [vmem:[#allocation7 + $0x3f0] sm:$0xff]
    %v232 = vld [vmem:[#allocation7 + $0x3f8] sm:$0xff]
    %v233 = vld [vmem:[#allocation7 + $0x400] sm:$0xff]
    %v234 = vld [vmem:[#allocation7 + $0x408] sm:$0xff]
    %v235 = vld [vmem:[#allocation7 + $0x410] sm:$0xff]
    %v236 = vld [vmem:[#allocation7 + $0x418] sm:$0xff]
    %v237 = vld [vmem:[#allocation7 + $0x420] sm:$0xff]
    %v238 = vld [vmem:[#allocation7 + $0x428] sm:$0xff]
    %v239 = vld [vmem:[#allocation7 + $0x430] sm:$0xff]
    %v240 = vld [vmem:[#allocation7 + $0x438] sm:$0xff]
    %v241 = vld [vmem:[#allocation7 + $0x440] sm:$0xff]
    %v242 = vld [vmem:[#allocation7 + $0x448] sm:$0xff]
    %v243 = vld [vmem:[#allocation7 + $0x450] sm:$0xff]
    %v244 = vld [vmem:[#allocation7 + $0x458] sm:$0xff]
    %v245 = vld [vmem:[#allocation7 + $0x460] sm:$0xff]
    %v246 = vld [vmem:[#allocation7 + $0x468] sm:$0xff]
    %v247 = vld [vmem:[#allocation7 + $0x470] sm:$0xff]
    %v248 = vld [vmem:[#allocation7 + $0x478] sm:$0xff]
    %v249 = vld [vmem:[#allocation7 + $0x480] sm:$0xff]
    %v250 = vld [vmem:[#allocation7 + $0x488] sm:$0xff]
    %v251 = vld [vmem:[#allocation7 + $0x490] sm:$0xff]
    %v252 = vld [vmem:[#allocation7 + $0x498] sm:$0xff]
    %v253 = vld [vmem:[#allocation7 + $0x4a0] sm:$0xff]
    %v254 = vld [vmem:[#allocation7 + $0x4a8] sm:$0xff]
    %v255 = vld [vmem:[#allocation7 + $0x4b0] sm:$0xff]
    %v256 = vld [vmem:[#allocation7 + $0x4b8] sm:$0xff]
    %v257 = vld [vmem:[#allocation7 + $0x4c0] sm:$0xff]
    %v258 = vld [vmem:[#allocation7 + $0x4c8] sm:$0xff]
    %v259 = vld [vmem:[#allocation7 + $0x4d0] sm:$0xff]
    %v260 = vld [vmem:[#allocation7 + $0x4d8] sm:$0xff]
    %v261 = vld [vmem:[#allocation7 + $0x4e0] sm:$0xff]
    %v262 = vld [vmem:[#allocation7 + $0x4e8] sm:$0xff]
    %v263 = vld [vmem:[#allocation7 + $0x4f0] sm:$0xff]
    %v264 = vld [vmem:[#allocation7 + $0x4f8] sm:$0xff]
    %v265 = vld [vmem:[#allocation7 + $0x500] sm:$0xff]
    %v266 = vld [vmem:[#allocation7 + $0x508] sm:$0xff]
    %v267 = vld [vmem:[#allocation7 + $0x510] sm:$0xff]
    %v268 = vld [vmem:[#allocation7 + $0x518] sm:$0xff]
    %v269 = vld [vmem:[#allocation7 + $0x520] sm:$0xff]
    %v270 = vld [vmem:[#allocation7 + $0x528] sm:$0xff]
    %v271 = vld [vmem:[#allocation7 + $0x530] sm:$0xff]
    %v272 = vld [vmem:[#allocation7 + $0x538] sm:$0xff]
    %v273 = vld [vmem:[#allocation7 + $0x540] sm:$0xff]
    %v274 = vld [vmem:[#allocation7 + $0x548] sm:$0xff]
    %v275 = vld [vmem:[#allocation7 + $0x550] sm:$0xff]
    %v276 = vld [vmem:[#allocation7 + $0x558] sm:$0xff]
    %v277 = vld [vmem:[#allocation7 + $0x560] sm:$0xff]
    %v278 = vld [vmem:[#allocation7 + $0x568] sm:$0xff]
    %v279 = vld [vmem:[#allocation7 + $0x570] sm:$0xff]
    %v280 = vld [vmem:[#allocation7 + $0x578] sm:$0xff]
    %v281 = vld [vmem:[#allocation7 + $0x580] sm:$0xff]
    %v282 = vld [vmem:[#allocation7 + $0x588] sm:$0xff]
    %v283 = vld [vmem:[#allocation7 + $0x590] sm:$0xff]
    %v284 = vld [vmem:[#allocation7 + $0x598] sm:$0xff]
    %v285 = vld [vmem:[#allocation7 + $0x5a0] sm:$0xff]
    %v286 = vld [vmem:[#allocation7 + $0x5a8] sm:$0xff]
    %v287 = vld [vmem:[#allocation7 + $0x5b0] sm:$0xff]
    %v288 = vld [vmem:[#allocation7 + $0x5b8] sm:$0xff]
    %v289 = vld [vmem:[#allocation7 + $0x5c0] sm:$0xff]
    %v290 = vld [vmem:[#allocation7 + $0x5c8] sm:$0xff]
    %v291 = vld [vmem:[#allocation7 + $0x5d0] sm:$0xff]
    %v292 = vld [vmem:[#allocation7 + $0x5d8] sm:$0xff]
    %v293 = vld [vmem:[#allocation7 + $0x5e0] sm:$0xff]
    %v294 = vld [vmem:[#allocation7 + $0x5e8] sm:$0xff]
    %v295 = vld [vmem:[#allocation7 + $0x5f0] sm:$0xff]
    %v296 = vld [vmem:[#allocation7 + $0x5f8] sm:$0xff]
    %v297 = vld [vmem:[#allocation7 + $0x600] sm:$0xff]
    %v298 = vld [vmem:[#allocation7 + $0x608] sm:$0xff]
    %v299 = vld [vmem:[#allocation7 + $0x610] sm:$0xff]
    %v300 = vld [vmem:[#allocation7 + $0x618] sm:$0xff]
    %v301 = vld [vmem:[#allocation7 + $0x620] sm:$0xff]
    %v302 = vld [vmem:[#allocation7 + $0x628] sm:$0xff]
    %v303 = vld [vmem:[#allocation7 + $0x630] sm:$0xff]
    %v304 = vld [vmem:[#allocation7 + $0x638] sm:$0xff]
    %v305 = vld [vmem:[#allocation7 + $0x640] sm:$0xff]
    %v306 = vld [vmem:[#allocation7 + $0x648] sm:$0xff]
    %v307 = vld [vmem:[#allocation7 + $0x650] sm:$0xff]
    %v308 = vld [vmem:[#allocation7 + $0x658] sm:$0xff]
    %v309 = vld [vmem:[#allocation7 + $0x660] sm:$0xff]
    %v310 = vld [vmem:[#allocation7 + $0x668] sm:$0xff]
    %v311 = vld [vmem:[#allocation7 + $0x670] sm:$0xff]
    %v312 = vld [vmem:[#allocation7 + $0x678] sm:$0xff]
    %v313 = vld [vmem:[#allocation7 + $0x680] sm:$0xff]
    %v314 = vld [vmem:[#allocation7 + $0x688] sm:$0xff]
    %v315 = vld [vmem:[#allocation7 + $0x690] sm:$0xff]
    %v316 = vld [vmem:[#allocation7 + $0x698] sm:$0xff]
    %v317 = vld [vmem:[#allocation7 + $0x6a0] sm:$0xff]
    %v318 = vld [vmem:[#allocation7 + $0x6a8] sm:$0xff]
    %v319 = vld [vmem:[#allocation7 + $0x6b0] sm:$0xff]
    %v320 = vld [vmem:[#allocation7 + $0x6b8] sm:$0xff]
    %v321 = vld [vmem:[#allocation7 + $0x6c0] sm:$0xff]
    %v322 = vld [vmem:[#allocation7 + $0x6c8] sm:$0xff]
    %v323 = vld [vmem:[#allocation7 + $0x6d0] sm:$0xff]
    %v324 = vld [vmem:[#allocation7 + $0x6d8] sm:$0xff]
    %v325 = vld [vmem:[#allocation7 + $0x6e0] sm:$0xff]
    %v326 = vld [vmem:[#allocation7 + $0x6e8] sm:$0xff]
    %v327 = vld [vmem:[#allocation7 + $0x6f0] sm:$0xff]
    %v328 = vld [vmem:[#allocation7 + $0x6f8] sm:$0xff]
    %v329 = vld [vmem:[#allocation7 + $0x700] sm:$0xff]
    %v330 = vld [vmem:[#allocation7 + $0x708] sm:$0xff]
    %v331 = vld [vmem:[#allocation7 + $0x710] sm:$0xff]
    %v332 = vld [vmem:[#allocation7 + $0x718] sm:$0xff]
    %v333 = vld [vmem:[#allocation7 + $0x720] sm:$0xff]
    %v334 = vld [vmem:[#allocation7 + $0x728] sm:$0xff]
    %v335 = vld [vmem:[#allocation7 + $0x730] sm:$0xff]
    %v336 = vld [vmem:[#allocation7 + $0x738] sm:$0xff]
    %v337 = vld [vmem:[#allocation7 + $0x740] sm:$0xff]
    %v338 = vld [vmem:[#allocation7 + $0x748] sm:$0xff]
    %v339 = vld [vmem:[#allocation7 + $0x750] sm:$0xff]
    %v340 = vld [vmem:[#allocation7 + $0x758] sm:$0xff]
    %v341 = vld [vmem:[#allocation7 + $0x760] sm:$0xff]
    %v342 = vld [vmem:[#allocation7 + $0x768] sm:$0xff]
    %v343 = vld [vmem:[#allocation7 + $0x770] sm:$0xff]
    %v344 = vld [vmem:[#allocation7 + $0x778] sm:$0xff]
    %v345 = vld [vmem:[#allocation7 + $0x780] sm:$0xff]
    %v346 = vld [vmem:[#allocation7 + $0x788] sm:$0xff]
    %v347 = vld [vmem:[#allocation7 + $0x790] sm:$0xff]
    %v348 = vld [vmem:[#allocation7 + $0x798] sm:$0xff]
    %v349 = vld [vmem:[#allocation7 + $0x7a0] sm:$0xff]
    %v350 = vld [vmem:[#allocation7 + $0x7a8] sm:$0xff]
    %v351 = vld [vmem:[#allocation7 + $0x7b0] sm:$0xff]
    %v352 = vld [vmem:[#allocation7 + $0x7b8] sm:$0xff]
    %v353 = vld [vmem:[#allocation7 + $0x7c0] sm:$0xff]
    %v354 = vld [vmem:[#allocation7 + $0x7c8] sm:$0xff]
    %v355 = vld [vmem:[#allocation7 + $0x7d0] sm:$0xff]
    %v356 = vld [vmem:[#allocation7 + $0x7d8] sm:$0xff]
    %v357 = vld [vmem:[#allocation7 + $0x7e0] sm:$0xff]
    %v358 = vld [vmem:[#allocation7 + $0x7e8] sm:$0xff]
    %v359 = vld [vmem:[#allocation7 + $0x7f0] sm:$0xff]
    %v360 = vld [vmem:[#allocation7 + $0x7f8] sm:$0xff]
    %v361 = vld [vmem:[#allocation7 + $0x800] sm:$0xff]
    %v362 = vld [vmem:[#allocation7 + $0x808] sm:$0xff]
    %v363 = vld [vmem:[#allocation7 + $0x810] sm:$0xff]
    %v364 = vld [vmem:[#allocation7 + $0x818] sm:$0xff]
    %v365 = vld [vmem:[#allocation7 + $0x820] sm:$0xff]
    %v366 = vld [vmem:[#allocation7 + $0x828] sm:$0xff]
    %v367 = vld [vmem:[#allocation7 + $0x830] sm:$0xff]
    %v368 = vld [vmem:[#allocation7 + $0x838] sm:$0xff]
    %v369 = vld [vmem:[#allocation7 + $0x840] sm:$0xff]
    %v370 = vld [vmem:[#allocation7 + $0x848] sm:$0xff]
    %v371 = vld [vmem:[#allocation7 + $0x850] sm:$0xff]
    %v372 = vld [vmem:[#allocation7 + $0x858] sm:$0xff]
    %v373 = vld [vmem:[#allocation7 + $0x860] sm:$0xff]
    %v374 = vld [vmem:[#allocation7 + $0x868] sm:$0xff]
    %v375 = vld [vmem:[#allocation7 + $0x870] sm:$0xff]
    %v376 = vld [vmem:[#allocation7 + $0x878] sm:$0xff]
    %v377 = vld [vmem:[#allocation7 + $0x880] sm:$0xff]
    %v378 = vld [vmem:[#allocation7 + $0x888] sm:$0xff]
    %v379 = vld [vmem:[#allocation7 + $0x890] sm:$0xff]
    %v380 = vld [vmem:[#allocation7 + $0x898] sm:$0xff]
    %v381 = vld [vmem:[#allocation7 + $0x8a0] sm:$0xff]
    %v382 = vld [vmem:[#allocation7 + $0x8a8] sm:$0xff]
    %v383 = vld [vmem:[#allocation7 + $0x8b0] sm:$0xff]
    %v384 = vld [vmem:[#allocation7 + $0x8b8] sm:$0xff]
    %v385 = vld [vmem:[#allocation7 + $0x8c0] sm:$0xff]
    %v386 = vld [vmem:[#allocation7 + $0x8c8] sm:$0xff]
    %v387 = vld [vmem:[#allocation7 + $0x8d0] sm:$0xff]
    %v388 = vld [vmem:[#allocation7 + $0x8d8] sm:$0xff]
    %v389 = vld [vmem:[#allocation7 + $0x8e0] sm:$0xff]
    %v390 = vld [vmem:[#allocation7 + $0x8e8] sm:$0xff]
    %v391 = vld [vmem:[#allocation7 + $0x8f0] sm:$0xff]
    %v392 = vld [vmem:[#allocation7 + $0x8f8] sm:$0xff]
    %v393 = vld [vmem:[#allocation7 + $0x900] sm:$0xff]
    %v394 = vld [vmem:[#allocation7 + $0x908] sm:$0xff]
    %v395 = vld [vmem:[#allocation7 + $0x910] sm:$0xff]
    %v396 = vld [vmem:[#allocation7 + $0x918] sm:$0xff]
    %v397 = vld [vmem:[#allocation7 + $0x920] sm:$0xff]
    %v398 = vld [vmem:[#allocation7 + $0x928] sm:$0xff]
    %v399 = vld [vmem:[#allocation7 + $0x930] sm:$0xff]
    %v400 = vld [vmem:[#allocation7 + $0x938] sm:$0xff]
    %v401 = vld [vmem:[#allocation7 + $0x940] sm:$0xff]
    %v402 = vld [vmem:[#allocation7 + $0x948] sm:$0xff]
    %v403 = vld [vmem:[#allocation7 + $0x950] sm:$0xff]
    %v404 = vld [vmem:[#allocation7 + $0x958] sm:$0xff]
    %v405 = vld [vmem:[#allocation7 + $0x960] sm:$0xff]
    %v406 = vld [vmem:[#allocation7 + $0x968] sm:$0xff]
    %v407 = vld [vmem:[#allocation7 + $0x970] sm:$0xff]
    %v408 = vld [vmem:[#allocation7 + $0x978] sm:$0xff]
    %v409 = vld [vmem:[#allocation7 + $0x980] sm:$0xff]
    %v410 = vld [vmem:[#allocation7 + $0x988] sm:$0xff]
    %v411 = vld [vmem:[#allocation7 + $0x990] sm:$0xff]
    %v412 = vld [vmem:[#allocation7 + $0x998] sm:$0xff]
    %v413 = vld [vmem:[#allocation7 + $0x9a0] sm:$0xff]
    %v414 = vld [vmem:[#allocation7 + $0x9a8] sm:$0xff]
    %v415 = vld [vmem:[#allocation7 + $0x9b0] sm:$0xff]
    %v416 = vld [vmem:[#allocation7 + $0x9b8] sm:$0xff]
    %v417 = vld [vmem:[#allocation7 + $0x9c0] sm:$0xff]
    %v418 = vld [vmem:[#allocation7 + $0x9c8] sm:$0xff]
    %v419 = vld [vmem:[#allocation7 + $0x9d0] sm:$0xff]
    %v420 = vld [vmem:[#allocation7 + $0x9d8] sm:$0xff]
    %v421 = vld [vmem:[#allocation7 + $0x9e0] sm:$0xff]
    %v422 = vld [vmem:[#allocation7 + $0x9e8] sm:$0xff]
    %v423 = vld [vmem:[#allocation7 + $0x9f0] sm:$0xff]
    %v424 = vld [vmem:[#allocation7 + $0x9f8] sm:$0xff]
    %425 = vmatpush.msra.mxu0 %v255
    %426 = vmatpush.msra.mxu0 %v245
    %427 = vmatpush.msra.mxu0 %v235
    %428 = vmatpush.msra.mxu0 %v225
    %429 = vmatpush.msra.mxu0 %v215
    %430 = vmatpush.msra.mxu0 %v205
    %431 = vmatpush.msra.mxu0 %v195
    %432 = vmatpush.msra.mxu0 %v185
    %433 = vmatpush.msra.mxu0 %v175
    %434 = vmatpush.msra.mxu0 %v165
    %435 = vmatpush.msra.mxu0 %v155
    %436 = vmatpush.msra.mxu0 %v145
    %437 = vmatpush.msra.mxu0 %v135
    %438 = vmatpush.msra.mxu0 %v125
    %439 = vmatpush.msra.mxu0 %v115
    %440 = vmatpush.msra.mxu0 %v105
    %441 = vmatmul.f32.gmra.mxu0 %v103
    %v442 = vpop.f32.mrf.mxu0
    %v443 = vadd.f32 0.0, %v442
    %444 = vdwg.mxu0
    %445 = vmatpush.msra.mxu0 %v415
    %446 = vmatpush.msra.mxu0 %v405
    %447 = vmatpush.msra.mxu0 %v395
    %448 = vmatpush.msra.mxu0 %v385
    %449 = vmatpush.msra.mxu0 %v375
    %450 = vmatpush.msra.mxu0 %v365
    %451 = vmatpush.msra.mxu0 %v355
    %452 = vmatpush.msra.mxu0 %v345
    %453 = vmatpush.msra.mxu0 %v335
    %454 = vmatpush.msra.mxu0 %v325
    %455 = vmatpush.msra.mxu0 %v315
    %456 = vmatpush.msra.mxu0 %v305
    %457 = vmatpush.msra.mxu0 %v295
    %458 = vmatpush.msra.mxu0 %v285
    %459 = vmatpush.msra.mxu0 %v275
    %460 = vmatpush.msra.mxu0 %v265
    %461 = vmatmul.f32.gmra.mxu0 %v104
    %v462 = vpop.f32.mrf.mxu0
    %v463 = vadd.f32 %v443, %v462
    %464 = vdwg.mxu0
    %465 = vmatpush.msra.mxu0 %v256
    %466 = vmatpush.msra.mxu0 %v246
    %467 = vmatpush.msra.mxu0 %v236
    %468 = vmatpush.msra.mxu0 %v226
    %469 = vmatpush.msra.mxu0 %v216
    %470 = vmatpush.msra.mxu0 %v206
    %471 = vmatpush.msra.mxu0 %v196
    %472 = vmatpush.msra.mxu0 %v186
    %473 = vmatpush.msra.mxu0 %v176
    %474 = vmatpush.msra.mxu0 %v166
    %475 = vmatpush.msra.mxu0 %v156
    %476 = vmatpush.msra.mxu0 %v146
    %477 = vmatpush.msra.mxu0 %v136
    %478 = vmatpush.msra.mxu0 %v126
    %479 = vmatpush.msra.mxu0 %v116
    %480 = vmatpush.msra.mxu0 %v106
    %481 = vmatmul.f32.gmra.mxu0 %v103
    %v482 = vpop.f32.mrf.mxu0
    %v483 = vadd.f32 0.0, %v482
    %484 = vdwg.mxu0
    %485 = vmatpush.msra.mxu0 %v416
    %486 = vmatpush.msra.mxu0 %v406
    %487 = vmatpush.msra.mxu0 %v396
    %488 = vmatpush.msra.mxu0 %v386
    %489 = vmatpush.msra.mxu0 %v376
    %490 = vmatpush.msra.mxu0 %v366
    %491 = vmatpush.msra.mxu0 %v356
    %492 = vmatpush.msra.mxu0 %v346
    %493 = vmatpush.msra.mxu0 %v336
    %494 = vmatpush.msra.mxu0 %v326
    %495 = vmatpush.msra.mxu0 %v316
    %496 = vmatpush.msra.mxu0 %v306
    %497 = vmatpush.msra.mxu0 %v296
    %498 = vmatpush.msra.mxu0 %v286
    %499 = vmatpush.msra.mxu0 %v276
    %500 = vmatpush.msra.mxu0 %v266
    %501 = vmatmul.f32.gmra.mxu0 %v104
    %v502 = vpop.f32.mrf.mxu0
    %v503 = vadd.f32 %v483, %v502
    %504 = vdwg.mxu0
    %505 = vmatpush.msra.mxu0 %v257
    %506 = vmatpush.msra.mxu0 %v247
    %507 = vmatpush.msra.mxu0 %v237
    %508 = vmatpush.msra.mxu0 %v227
    %509 = vmatpush.msra.mxu0 %v217
    %510 = vmatpush.msra.mxu0 %v207
    %511 = vmatpush.msra.mxu0 %v197
    %512 = vmatpush.msra.mxu0 %v187
    %513 = vmatpush.msra.mxu0 %v177
    %514 = vmatpush.msra.mxu0 %v167
    %515 = vmatpush.msra.mxu0 %v157
    %516 = vmatpush.msra.mxu0 %v147
    %517 = vmatpush.msra.mxu0 %v137
    %518 = vmatpush.msra.mxu0 %v127
    %519 = vmatpush.msra.mxu0 %v117
    %520 = vmatpush.msra.mxu0 %v107
    %521 = vmatmul.f32.gmra.mxu0 %v103
    %v522 = vpop.f32.mrf.mxu0
    %v523 = vadd.f32 0.0, %v522
    %524 = vdwg.mxu0
    %525 = vmatpush.msra.mxu0 %v417
    %526 = vmatpush.msra.mxu0 %v407
    %527 = vmatpush.msra.mxu0 %v397
    %528 = vmatpush.msra.mxu0 %v387
    %529 = vmatpush.msra.mxu0 %v377
    %530 = vmatpush.msra.mxu0 %v367
    %531 = vmatpush.msra.mxu0 %v357
    %532 = vmatpush.msra.mxu0 %v347
    %533 = vmatpush.msra.mxu0 %v337
    %534 = vmatpush.msra.mxu0 %v327
    %535 = vmatpush.msra.mxu0 %v317
    %536 = vmatpush.msra.mxu0 %v307
    %537 = vmatpush.msra.mxu0 %v297
    %538 = vmatpush.msra.mxu0 %v287
    %539 = vmatpush.msra.mxu0 %v277
    %540 = vmatpush.msra.mxu0 %v267
    %541 = vmatmul.f32.gmra.mxu0 %v104
    %v542 = vpop.f32.mrf.mxu0
    %v543 = vadd.f32 %v523, %v542
    %544 = vdwg.mxu0
    %545 = vmatpush.msra.mxu0 %v258
    %546 = vmatpush.msra.mxu0 %v248
    %547 = vmatpush.msra.mxu0 %v238
    %548 = vmatpush.msra.mxu0 %v228
    %549 = vmatpush.msra.mxu0 %v218
    %550 = vmatpush.msra.mxu0 %v208
    %551 = vmatpush.msra.mxu0 %v198
    %552 = vmatpush.msra.mxu0 %v188
    %553 = vmatpush.msra.mxu0 %v178
    %554 = vmatpush.msra.mxu0 %v168
    %555 = vmatpush.msra.mxu0 %v158
    %556 = vmatpush.msra.mxu0 %v148
    %557 = vmatpush.msra.mxu0 %v138
    %558 = vmatpush.msra.mxu0 %v128
    %559 = vmatpush.msra.mxu0 %v118
    %560 = vmatpush.msra.mxu0 %v108
    %561 = vmatmul.f32.gmra.mxu0 %v103
    %v562 = vpop.f32.mrf.mxu0
    %v563 = vadd.f32 0.0, %v562
    %564 = vdwg.mxu0
    %565 = vmatpush.msra.mxu0 %v418
    %566 = vmatpush.msra.mxu0 %v408
    %567 = vmatpush.msra.mxu0 %v398
    %568 = vmatpush.msra.mxu0 %v388
    %569 = vmatpush.msra.mxu0 %v378
    %570 = vmatpush.msra.mxu0 %v368
    %571 = vmatpush.msra.mxu0 %v358
    %572 = vmatpush.msra.mxu0 %v348
    %573 = vmatpush.msra.mxu0 %v338
    %574 = vmatpush.msra.mxu0 %v328
    %575 = vmatpush.msra.mxu0 %v318
    %576 = vmatpush.msra.mxu0 %v308
    %577 = vmatpush.msra.mxu0 %v298
    %578 = vmatpush.msra.mxu0 %v288
    %579 = vmatpush.msra.mxu0 %v278
    %580 = vmatpush.msra.mxu0 %v268
    %581 = vmatmul.f32.gmra.mxu0 %v104
    %v582 = vpop.f32.mrf.mxu0
    %v583 = vadd.f32 %v563, %v582
    %584 = vdwg.mxu0
    %585 = vmatpush.msra.mxu0 %v259
    %586 = vmatpush.msra.mxu0 %v249
    %587 = vmatpush.msra.mxu0 %v239
    %588 = vmatpush.msra.mxu0 %v229
    %589 = vmatpush.msra.mxu0 %v219
    %590 = vmatpush.msra.mxu0 %v209
    %591 = vmatpush.msra.mxu0 %v199
    %592 = vmatpush.msra.mxu0 %v189
    %593 = vmatpush.msra.mxu0 %v179
    %594 = vmatpush.msra.mxu0 %v169
    %595 = vmatpush.msra.mxu0 %v159
    %596 = vmatpush.msra.mxu0 %v149
    %597 = vmatpush.msra.mxu0 %v139
    %598 = vmatpush.msra.mxu0 %v129
    %599 = vmatpush.msra.mxu0 %v119
    %600 = vmatpush.msra.mxu0 %v109
    %601 = vmatmul.f32.gmra.mxu0 %v103
    %v602 = vpop.f32.mrf.mxu0
    %v603 = vadd.f32 0.0, %v602
    %604 = vdwg.mxu0
    %605 = vmatpush.msra.mxu0 %v419
    %606 = vmatpush.msra.mxu0 %v409
    %607 = vmatpush.msra.mxu0 %v399
    %608 = vmatpush.msra.mxu0 %v389
    %609 = vmatpush.msra.mxu0 %v379
    %610 = vmatpush.msra.mxu0 %v369
    %611 = vmatpush.msra.mxu0 %v359
    %612 = vmatpush.msra.mxu0 %v349
    %613 = vmatpush.msra.mxu0 %v339
    %614 = vmatpush.msra.mxu0 %v329
    %615 = vmatpush.msra.mxu0 %v319
    %616 = vmatpush.msra.mxu0 %v309
    %617 = vmatpush.msra.mxu0 %v299
    %618 = vmatpush.msra.mxu0 %v289
    %619 = vmatpush.msra.mxu0 %v279
    %620 = vmatpush.msra.mxu0 %v269
    %621 = vmatmul.f32.gmra.mxu0 %v104
    %v622 = vpop.f32.mrf.mxu0
    %v623 = vadd.f32 %v603, %v622
    %624 = vdwg.mxu0
    %625 = vmatpush.msra.mxu0 %v260
    %626 = vmatpush.msra.mxu0 %v250
    %627 = vmatpush.msra.mxu0 %v240
    %628 = vmatpush.msra.mxu0 %v230
    %629 = vmatpush.msra.mxu0 %v220
    %630 = vmatpush.msra.mxu0 %v210
    %631 = vmatpush.msra.mxu0 %v200
    %632 = vmatpush.msra.mxu0 %v190
    %633 = vmatpush.msra.mxu0 %v180
    %634 = vmatpush.msra.mxu0 %v170
    %635 = vmatpush.msra.mxu0 %v160
    %636 = vmatpush.msra.mxu0 %v150
    %637 = vmatpush.msra.mxu0 %v140
    %638 = vmatpush.msra.mxu0 %v130
    %639 = vmatpush.msra.mxu0 %v120
    %640 = vmatpush.msra.mxu0 %v110
    %641 = vmatmul.f32.gmra.mxu0 %v103
    %v642 = vpop.f32.mrf.mxu0
    %v643 = vadd.f32 0.0, %v642
    %644 = vdwg.mxu0
    %645 = vmatpush.msra.mxu0 %v420
    %646 = vmatpush.msra.mxu0 %v410
    %647 = vmatpush.msra.mxu0 %v400
    %648 = vmatpush.msra.mxu0 %v390
    %649 = vmatpush.msra.mxu0 %v380
    %650 = vmatpush.msra.mxu0 %v370
    %651 = vmatpush.msra.mxu0 %v360
    %652 = vmatpush.msra.mxu0 %v350
    %653 = vmatpush.msra.mxu0 %v340
    %654 = vmatpush.msra.mxu0 %v330
    %655 = vmatpush.msra.mxu0 %v320
    %656 = vmatpush.msra.mxu0 %v310
    %657 = vmatpush.msra.mxu0 %v300
    %658 = vmatpush.msra.mxu0 %v290
    %659 = vmatpush.msra.mxu0 %v280
    %660 = vmatpush.msra.mxu0 %v270
    %661 = vmatmul.f32.gmra.mxu0 %v104
    %v662 = vpop.f32.mrf.mxu0
    %v663 = vadd.f32 %v643, %v662
    %664 = vdwg.mxu0
    %665 = vmatpush.msra.mxu0 %v261
    %666 = vmatpush.msra.mxu0 %v251
    %667 = vmatpush.msra.mxu0 %v241
    %668 = vmatpush.msra.mxu0 %v231
    %669 = vmatpush.msra.mxu0 %v221
    %670 = vmatpush.msra.mxu0 %v211
    %671 = vmatpush.msra.mxu0 %v201
    %672 = vmatpush.msra.mxu0 %v191
    %673 = vmatpush.msra.mxu0 %v181
    %674 = vmatpush.msra.mxu0 %v171
    %675 = vmatpush.msra.mxu0 %v161
    %676 = vmatpush.msra.mxu0 %v151
    %677 = vmatpush.msra.mxu0 %v141
    %678 = vmatpush.msra.mxu0 %v131
    %679 = vmatpush.msra.mxu0 %v121
    %680 = vmatpush.msra.mxu0 %v111
    %681 = vmatmul.f32.gmra.mxu0 %v103
    %v682 = vpop.f32.mrf.mxu0
    %v683 = vadd.f32 0.0, %v682
    %684 = vdwg.mxu0
    %685 = vmatpush.msra.mxu0 %v421
    %686 = vmatpush.msra.mxu0 %v411
    %687 = vmatpush.msra.mxu0 %v401
    %688 = vmatpush.msra.mxu0 %v391
    %689 = vmatpush.msra.mxu0 %v381
    %690 = vmatpush.msra.mxu0 %v371
    %691 = vmatpush.msra.mxu0 %v361
    %692 = vmatpush.msra.mxu0 %v351
    %693 = vmatpush.msra.mxu0 %v341
    %694 = vmatpush.msra.mxu0 %v331
    %695 = vmatpush.msra.mxu0 %v321
    %696 = vmatpush.msra.mxu0 %v311
    %697 = vmatpush.msra.mxu0 %v301
    %698 = vmatpush.msra.mxu0 %v291
    %699 = vmatpush.msra.mxu0 %v281
    %700 = vmatpush.msra.mxu0 %v271
    %701 = vmatmul.f32.gmra.mxu0 %v104
    %v702 = vpop.f32.mrf.mxu0
    %v703 = vadd.f32 %v683, %v702
    %704 = vdwg.mxu0
    %705 = vmatpush.msra.mxu0 %v262
    %706 = vmatpush.msra.mxu0 %v252
    %707 = vmatpush.msra.mxu0 %v242
    %708 = vmatpush.msra.mxu0 %v232
    %709 = vmatpush.msra.mxu0 %v222
    %710 = vmatpush.msra.mxu0 %v212
    %711 = vmatpush.msra.mxu0 %v202
    %712 = vmatpush.msra.mxu0 %v192
    %713 = vmatpush.msra.mxu0 %v182
    %714 = vmatpush.msra.mxu0 %v172
    %715 = vmatpush.msra.mxu0 %v162
    %716 = vmatpush.msra.mxu0 %v152
    %717 = vmatpush.msra.mxu0 %v142
    %718 = vmatpush.msra.mxu0 %v132
    %719 = vmatpush.msra.mxu0 %v122
    %720 = vmatpush.msra.mxu0 %v112
    %721 = vmatmul.f32.gmra.mxu0 %v103
    %v722 = vpop.f32.mrf.mxu0
    %v723 = vadd.f32 0.0, %v722
    %724 = vdwg.mxu0
    %725 = vmatpush.msra.mxu0 %v422
    %726 = vmatpush.msra.mxu0 %v412
    %727 = vmatpush.msra.mxu0 %v402
    %728 = vmatpush.msra.mxu0 %v392
    %729 = vmatpush.msra.mxu0 %v382
    %730 = vmatpush.msra.mxu0 %v372
    %731 = vmatpush.msra.mxu0 %v362
    %732 = vmatpush.msra.mxu0 %v352
    %733 = vmatpush.msra.mxu0 %v342
    %734 = vmatpush.msra.mxu0 %v332
    %735 = vmatpush.msra.mxu0 %v322
    %736 = vmatpush.msra.mxu0 %v312
    %737 = vmatpush.msra.mxu0 %v302
    %738 = vmatpush.msra.mxu0 %v292
    %739 = vmatpush.msra.mxu0 %v282
    %740 = vmatpush.msra.mxu0 %v272
    %741 = vmatmul.f32.gmra.mxu0 %v104
    %v742 = vpop.f32.mrf.mxu0
    %v743 = vadd.f32 %v723, %v742
    %744 = vdwg.mxu0
    %745 = vmatpush.msra.mxu0 %v263
    %746 = vmatpush.msra.mxu0 %v253
    %747 = vmatpush.msra.mxu0 %v243
    %748 = vmatpush.msra.mxu0 %v233
    %749 = vmatpush.msra.mxu0 %v223
    %750 = vmatpush.msra.mxu0 %v213
    %751 = vmatpush.msra.mxu0 %v203
    %752 = vmatpush.msra.mxu0 %v193
    %753 = vmatpush.msra.mxu0 %v183
    %754 = vmatpush.msra.mxu0 %v173
    %755 = vmatpush.msra.mxu0 %v163
    %756 = vmatpush.msra.mxu0 %v153
    %757 = vmatpush.msra.mxu0 %v143
    %758 = vmatpush.msra.mxu0 %v133
    %759 = vmatpush.msra.mxu0 %v123
    %760 = vmatpush.msra.mxu0 %v113
    %761 = vmatmul.f32.gmra.mxu0 %v103
    %v762 = vpop.f32.mrf.mxu0
    %v763 = vadd.f32 0.0, %v762
    %764 = vdwg.mxu0
    %765 = vmatpush.msra.mxu0 %v423
    %766 = vmatpush.msra.mxu0 %v413
    %767 = vmatpush.msra.mxu0 %v403
    %768 = vmatpush.msra.mxu0 %v393
    %769 = vmatpush.msra.mxu0 %v383
    %770 = vmatpush.msra.mxu0 %v373
    %771 = vmatpush.msra.mxu0 %v363
    %772 = vmatpush.msra.mxu0 %v353
    %773 = vmatpush.msra.mxu0 %v343
    %774 = vmatpush.msra.mxu0 %v333
    %775 = vmatpush.msra.mxu0 %v323
    %776 = vmatpush.msra.mxu0 %v313
    %777 = vmatpush.msra.mxu0 %v303
    %778 = vmatpush.msra.mxu0 %v293
    %779 = vmatpush.msra.mxu0 %v283
    %780 = vmatpush.msra.mxu0 %v273
    %781 = vmatmul.f32.gmra.mxu0 %v104
    %v782 = vpop.f32.mrf.mxu0
    %v783 = vadd.f32 %v763, %v782
    %784 = vdwg.mxu0
    %785 = vmatpush.msra.mxu0 %v264
    %786 = vmatpush.msra.mxu0 %v254
    %787 = vmatpush.msra.mxu0 %v244
    %788 = vmatpush.msra.mxu0 %v234
    %789 = vmatpush.msra.mxu0 %v224
    %790 = vmatpush.msra.mxu0 %v214
    %791 = vmatpush.msra.mxu0 %v204
    %792 = vmatpush.msra.mxu0 %v194
    %793 = vmatpush.msra.mxu0 %v184
    %794 = vmatpush.msra.mxu0 %v174
    %795 = vmatpush.msra.mxu0 %v164
    %796 = vmatpush.msra.mxu0 %v154
    %797 = vmatpush.msra.mxu0 %v144
    %798 = vmatpush.msra.mxu0 %v134
    %799 = vmatpush.msra.mxu0 %v124
    %800 = vmatpush.msra.mxu0 %v114
    %801 = vmatmul.f32.gmra.mxu0 %v103
    %v802 = vpop.f32.mrf.mxu0
    %v803 = vadd.f32 0.0, %v802
    %804 = vdwg.mxu0
    %805 = vmatpush.msra.mxu0 %v424
    %806 = vmatpush.msra.mxu0 %v414
    %807 = vmatpush.msra.mxu0 %v404
    %808 = vmatpush.msra.mxu0 %v394
    %809 = vmatpush.msra.mxu0 %v384
    %810 = vmatpush.msra.mxu0 %v374
    %811 = vmatpush.msra.mxu0 %v364
    %812 = vmatpush.msra.mxu0 %v354
    %813 = vmatpush.msra.mxu0 %v344
    %814 = vmatpush.msra.mxu0 %v334
    %815 = vmatpush.msra.mxu0 %v324
    %816 = vmatpush.msra.mxu0 %v314
    %817 = vmatpush.msra.mxu0 %v304
    %818 = vmatpush.msra.mxu0 %v294
    %819 = vmatpush.msra.mxu0 %v284
    %820 = vmatpush.msra.mxu0 %v274
    %821 = vmatmul.f32.gmra.mxu0 %v104
    %v822 = vpop.f32.mrf.mxu0
    %v823 = vadd.f32 %v803, %v822
    %824 = vdwg.mxu0
    %825 = vst [vmem:[#allocation2] sm:$0xff] %v463
    %826 = vst [vmem:[#allocation2 + $0x8] sm:$0xff] %v503
    %827 = vst [vmem:[#allocation2 + $0x10] sm:$0xff] %v543
    %828 = vst [vmem:[#allocation2 + $0x18] sm:$0xff] %v583
    %829 = vst [vmem:[#allocation2 + $0x20] sm:$0xff] %v623
    %830 = vst [vmem:[#allocation2 + $0x28] sm:$0xff] %v663
    %831 = vst [vmem:[#allocation2 + $0x30] sm:$0xff] %v703
    %832 = vst [vmem:[#allocation2 + $0x38] sm:$0xff] %v743
    %833 = vst [vmem:[#allocation2 + $0x40] sm:$0xff] %v783
    %834 = vst [vmem:[#allocation2 + $0x48] sm:$0xff] %v823
    %v835 = vld [vmem:[#allocation2] sm:$0xff]
    %v836 = vld [vmem:[#allocation2 + $0x8] sm:$0xff]
    %v837 = vld [vmem:[#allocation2 + $0x10] sm:$0xff]
    %v838 = vld [vmem:[#allocation2 + $0x18] sm:$0xff]
    %v839 = vld [vmem:[#allocation2 + $0x20] sm:$0xff]
    %v840 = vld [vmem:[#allocation2 + $0x28] sm:$0xff]
    %v841 = vld [vmem:[#allocation2 + $0x30] sm:$0xff]
    %v842 = vld [vmem:[#allocation2 + $0x38] sm:$0xff]
    %v843 = vld [vmem:[#allocation2 + $0x40] sm:$0xff]
    %v844 = vld [vmem:[#allocation2 + $0x48] sm:$0xff]
    %855 = vrot.lane.b32.xlu0 %v835, 35
    %v856 = vpop.permute.xlu0 %855
    %857 = vrot.lane.b32.xlu0 %v836, 35
    %v858 = vpop.permute.xlu0 %857
    %859 = vrot.lane.b32.xlu0 %v837, 35
    %v860 = vpop.permute.xlu0 %859
    %861 = vrot.lane.b32.xlu0 %v838, 35
    %v862 = vpop.permute.xlu0 %861
    %863 = vrot.lane.b32.xlu0 %v839, 35
    %v864 = vpop.permute.xlu0 %863
    %865 = vrot.lane.b32.xlu0 %v840, 35
    %v866 = vpop.permute.xlu0 %865
    %867 = vrot.lane.b32.xlu0 %v841, 35
    %v868 = vpop.permute.xlu0 %867
    %869 = vrot.lane.b32.xlu0 %v842, 35
    %v870 = vpop.permute.xlu0 %869
    %871 = vrot.lane.b32.xlu0 %v843, 35
    %v872 = vpop.permute.xlu0 %871
    %873 = vrot.lane.b32.xlu0 %v844, 35
    %v874 = vpop.permute.xlu0 %873
    %vm875 = vcmask 285696
    %v876 = vsel %vm875, %v856, %v858
    %v877 = vsel %vm875, %v858, %v860
    %v878 = vsel %vm875, %v860, %v862
    %v879 = vsel %vm875, %v862, %v864
    %v880 = vsel %vm875, %v864, %v866
    %v881 = vsel %vm875, %v866, %v868
    %v882 = vsel %vm875, %v868, %v870
    %v883 = vsel %vm875, %v870, %v872
    %v884 = vsel %vm875, %v872, %v874
    %894 = vst [vmem:[#allocation3] sm:$0xff] %v876
    %895 = vst [vmem:[#allocation3 + $0x8] sm:$0xff] %v877
    %896 = vst [vmem:[#allocation3 + $0x10] sm:$0xff] %v878
    %897 = vst [vmem:[#allocation3 + $0x18] sm:$0xff] %v879
    %898 = vst [vmem:[#allocation3 + $0x20] sm:$0xff] %v880
    %899 = vst [vmem:[#allocation3 + $0x28] sm:$0xff] %v881
    %900 = vst [vmem:[#allocation3 + $0x30] sm:$0xff] %v882
    %901 = vst [vmem:[#allocation3 + $0x38] sm:$0xff] %v883
    %vm902 = vcmask 523264
    %903 = vst.msk [vmem:[#allocation3 + $0x40] sm:$0xff] %vm902, %v884
    %v904 = vld [vmem:[#allocation2] sm:$0xff]
    %v905 = vld [vmem:[#allocation2 + $0x8] sm:$0xff]
    %v906 = vld [vmem:[#allocation2 + $0x10] sm:$0xff]
    %v907 = vld [vmem:[#allocation2 + $0x18] sm:$0xff]
    %v908 = vld [vmem:[#allocation2 + $0x20] sm:$0xff]
    %v909 = vld [vmem:[#allocation2 + $0x28] sm:$0xff]
    %v910 = vld [vmem:[#allocation2 + $0x30] sm:$0xff]
    %v911 = vld [vmem:[#allocation2 + $0x38] sm:$0xff]
    %v912 = vld [vmem:[#allocation2 + $0x40] sm:$0xff]
    %v913 = vld [vmem:[#allocation2 + $0x48] sm:$0xff]
    %924 = vrot.lane.b32.xlu0 %v904, 34
    %v925 = vpop.permute.xlu0 %924
    %926 = vrot.lane.b32.xlu0 %v905, 34
    %v927 = vpop.permute.xlu0 %926
    %928 = vrot.lane.b32.xlu0 %v906, 34
    %v929 = vpop.permute.xlu0 %928
    %930 = vrot.lane.b32.xlu0 %v907, 34
    %v931 = vpop.permute.xlu0 %930
    %932 = vrot.lane.b32.xlu0 %v908, 34
    %v933 = vpop.permute.xlu0 %932
    %934 = vrot.lane.b32.xlu0 %v909, 34
    %v935 = vpop.permute.xlu0 %934
    %936 = vrot.lane.b32.xlu0 %v910, 34
    %v937 = vpop.permute.xlu0 %936
    %938 = vrot.lane.b32.xlu0 %v911, 34
    %v939 = vpop.permute.xlu0 %938
    %940 = vrot.lane.b32.xlu0 %v912, 34
    %v941 = vpop.permute.xlu0 %940
    %942 = vrot.lane.b32.xlu0 %v913, 34
    %v943 = vpop.permute.xlu0 %942
    %vm944 = vcmask 277504
    %v945 = vsel %vm944, %v925, %v927
    %v946 = vsel %vm944, %v927, %v929
    %v947 = vsel %vm944, %v929, %v931
    %v948 = vsel %vm944, %v931, %v933
    %v949 = vsel %vm944, %v933, %v935
    %v950 = vsel %vm944, %v935, %v937
    %v951 = vsel %vm944, %v937, %v939
    %v952 = vsel %vm944, %v939, %v941
    %v953 = vsel %vm944, %v941, %v943
    %963 = vst [vmem:[#allocation3 + $0x48] sm:$0xff] %v945
    %964 = vst [vmem:[#allocation3 + $0x50] sm:$0xff] %v946
    %965 = vst [vmem:[#allocation3 + $0x58] sm:$0xff] %v947
    %966 = vst [vmem:[#allocation3 + $0x60] sm:$0xff] %v948
    %967 = vst [vmem:[#allocation3 + $0x68] sm:$0xff] %v949
    %968 = vst [vmem:[#allocation3 + $0x70] sm:$0xff] %v950
    %969 = vst [vmem:[#allocation3 + $0x78] sm:$0xff] %v951
    %970 = vst [vmem:[#allocation3 + $0x80] sm:$0xff] %v952
    %971 = vst.msk [vmem:[#allocation3 + $0x88] sm:$0xff] %vm902, %v953
    %v972 = vld [vmem:[#allocation2] sm:$0xff]
    %v973 = vld [vmem:[#allocation2 + $0x8] sm:$0xff]
    %v974 = vld [vmem:[#allocation2 + $0x10] sm:$0xff]
    %v975 = vld [vmem:[#allocation2 + $0x18] sm:$0xff]
    %v976 = vld [vmem:[#allocation2 + $0x20] sm:$0xff]
    %v977 = vld [vmem:[#allocation2 + $0x28] sm:$0xff]
    %v978 = vld [vmem:[#allocation2 + $0x30] sm:$0xff]
    %v979 = vld [vmem:[#allocation2 + $0x38] sm:$0xff]
    %v980 = vld [vmem:[#allocation2 + $0x40] sm:$0xff]
    %v981 = vld [vmem:[#allocation2 + $0x48] sm:$0xff]
    %992 = vrot.lane.b32.xlu0 %v972, 33
    %v993 = vpop.permute.xlu0 %992
    %994 = vrot.lane.b32.xlu0 %v973, 33
    %v995 = vpop.permute.xlu0 %994
    %996 = vrot.lane.b32.xlu0 %v974, 33
    %v997 = vpop.permute.xlu0 %996
    %998 = vrot.lane.b32.xlu0 %v975, 33
    %v999 = vpop.permute.xlu0 %998
    %1000 = vrot.lane.b32.xlu0 %v976, 33
    %v1001 = vpop.permute.xlu0 %1000
    %1002 = vrot.lane.b32.xlu0 %v977, 33
    %v1003 = vpop.permute.xlu0 %1002
    %1004 = vrot.lane.b32.xlu0 %v978, 33
    %v1005 = vpop.permute.xlu0 %1004
    %1006 = vrot.lane.b32.xlu0 %v979, 33
    %v1007 = vpop.permute.xlu0 %1006
    %1008 = vrot.lane.b32.xlu0 %v980, 33
    %v1009 = vpop.permute.xlu0 %1008
    %1010 = vrot.lane.b32.xlu0 %v981, 33
    %v1011 = vpop.permute.xlu0 %1010
    %vm1012 = vcmask 269312
    %v1013 = vsel %vm1012, %v993, %v995
    %v1014 = vsel %vm1012, %v995, %v997
    %v1015 = vsel %vm1012, %v997, %v999
    %v1016 = vsel %vm1012, %v999, %v1001
    %v1017 = vsel %vm1012, %v1001, %v1003
    %v1018 = vsel %vm1012, %v1003, %v1005
    %v1019 = vsel %vm1012, %v1005, %v1007
    %v1020 = vsel %vm1012, %v1007, %v1009
    %v1021 = vsel %vm1012, %v1009, %v1011
    %1031 = vst [vmem:[#allocation3 + $0x90] sm:$0xff] %v1013
    %1032 = vst [vmem:[#allocation3 + $0x98] sm:$0xff] %v1014
    %1033 = vst [vmem:[#allocation3 + $0xa0] sm:$0xff] %v1015
    %1034 = vst [vmem:[#allocation3 + $0xa8] sm:$0xff] %v1016
    %1035 = vst [vmem:[#allocation3 + $0xb0] sm:$0xff] %v1017
    %1036 = vst [vmem:[#allocation3 + $0xb8] sm:$0xff] %v1018
    %1037 = vst [vmem:[#allocation3 + $0xc0] sm:$0xff] %v1019
    %1038 = vst [vmem:[#allocation3 + $0xc8] sm:$0xff] %v1020
    %1039 = vst.msk [vmem:[#allocation3 + $0xd0] sm:$0xff] %vm902, %v1021
    %v1040 = vld [vmem:[#allocation2] sm:$0xff]
    %v1041 = vld [vmem:[#allocation2 + $0x8] sm:$0xff]
    %v1042 = vld [vmem:[#allocation2 + $0x10] sm:$0xff]
    %v1043 = vld [vmem:[#allocation2 + $0x18] sm:$0xff]
    %v1044 = vld [vmem:[#allocation2 + $0x20] sm:$0xff]
    %v1045 = vld [vmem:[#allocation2 + $0x28] sm:$0xff]
    %v1046 = vld [vmem:[#allocation2 + $0x30] sm:$0xff]
    %v1047 = vld [vmem:[#allocation2 + $0x38] sm:$0xff]
    %v1048 = vld [vmem:[#allocation2 + $0x40] sm:$0xff]
    %v1049 = vld [vmem:[#allocation2 + $0x48] sm:$0xff]
    %1060 = vrot.lane.b32.xlu0 %v1040, 1
    %v1061 = vpop.permute.xlu0 %1060
    %1062 = vrot.lane.b32.xlu0 %v1041, 1
    %v1063 = vpop.permute.xlu0 %1062
    %1064 = vrot.lane.b32.xlu0 %v1042, 1
    %v1065 = vpop.permute.xlu0 %1064
    %1066 = vrot.lane.b32.xlu0 %v1043, 1
    %v1067 = vpop.permute.xlu0 %1066
    %1068 = vrot.lane.b32.xlu0 %v1044, 1
    %v1069 = vpop.permute.xlu0 %1068
    %1070 = vrot.lane.b32.xlu0 %v1045, 1
    %v1071 = vpop.permute.xlu0 %1070
    %1072 = vrot.lane.b32.xlu0 %v1046, 1
    %v1073 = vpop.permute.xlu0 %1072
    %1074 = vrot.lane.b32.xlu0 %v1047, 1
    %v1075 = vpop.permute.xlu0 %1074
    %1076 = vrot.lane.b32.xlu0 %v1048, 1
    %v1077 = vpop.permute.xlu0 %1076
    %1078 = vrot.lane.b32.xlu0 %v1049, 1
    %v1079 = vpop.permute.xlu0 %1078
    %vm1080 = vcmask 7168
    %v1081 = vsel %vm1080, %v1061, %v1063
    %v1082 = vsel %vm1080, %v1063, %v1065
    %v1083 = vsel %vm1080, %v1065, %v1067
    %v1084 = vsel %vm1080, %v1067, %v1069
    %v1085 = vsel %vm1080, %v1069, %v1071
    %v1086 = vsel %vm1080, %v1071, %v1073
    %v1087 = vsel %vm1080, %v1073, %v1075
    %v1088 = vsel %vm1080, %v1075, %v1077
    %v1089 = vsel %vm1080, %v1077, %v1079
    %1099 = vst [vmem:[#allocation3 + $0xd8] sm:$0xff] %v1081
    %1100 = vst [vmem:[#allocation3 + $0xe0] sm:$0xff] %v1082
    %1101 = vst [vmem:[#allocation3 + $0xe8] sm:$0xff] %v1083
    %1102 = vst [vmem:[#allocation3 + $0xf0] sm:$0xff] %v1084
    %1103 = vst [vmem:[#allocation3 + $0xf8] sm:$0xff] %v1085
    %1104 = vst [vmem:[#allocation3 + $0x100] sm:$0xff] %v1086
    %1105 = vst [vmem:[#allocation3 + $0x108] sm:$0xff] %v1087
    %1106 = vst [vmem:[#allocation3 + $0x110] sm:$0xff] %v1088
    %1107 = vst.msk [vmem:[#allocation3 + $0x118] sm:$0xff] %vm902, %v1089
    %v1108 = vld [vmem:[#allocation2 + $0x8] sm:$0xff]
    %v1109 = vld [vmem:[#allocation2 + $0x10] sm:$0xff]
    %v1110 = vld [vmem:[#allocation2 + $0x18] sm:$0xff]
    %v1111 = vld [vmem:[#allocation2 + $0x20] sm:$0xff]
    %v1112 = vld [vmem:[#allocation2 + $0x28] sm:$0xff]
    %v1113 = vld [vmem:[#allocation2 + $0x30] sm:$0xff]
    %v1114 = vld [vmem:[#allocation2 + $0x38] sm:$0xff]
    %v1115 = vld [vmem:[#allocation2 + $0x40] sm:$0xff]
    %v1116 = vld [vmem:[#allocation2 + $0x48] sm:$0xff]
    %1117 = vst [vmem:[#allocation3 + $0x120] sm:$0xff] %v1108
    %1118 = vst [vmem:[#allocation3 + $0x128] sm:$0xff] %v1109
    %1119 = vst [vmem:[#allocation3 + $0x130] sm:$0xff] %v1110
    %1120 = vst [vmem:[#allocation3 + $0x138] sm:$0xff] %v1111
    %1121 = vst [vmem:[#allocation3 + $0x140] sm:$0xff] %v1112
    %1122 = vst [vmem:[#allocation3 + $0x148] sm:$0xff] %v1113
    %1123 = vst [vmem:[#allocation3 + $0x150] sm:$0xff] %v1114
    %1124 = vst [vmem:[#allocation3 + $0x158] sm:$0xff] %v1115
    %1125 = vst.msk [vmem:[#allocation3 + $0x160] sm:$0xff] %vm902, %v1116
    %v1126 = vld [vmem:[#allocation2 + $0x8] sm:$0xff]
    %v1127 = vld [vmem:[#allocation2 + $0x10] sm:$0xff]
    %v1128 = vld [vmem:[#allocation2 + $0x18] sm:$0xff]
    %v1129 = vld [vmem:[#allocation2 + $0x20] sm:$0xff]
    %v1130 = vld [vmem:[#allocation2 + $0x28] sm:$0xff]
    %v1131 = vld [vmem:[#allocation2 + $0x30] sm:$0xff]
    %v1132 = vld [vmem:[#allocation2 + $0x38] sm:$0xff]
    %v1133 = vld [vmem:[#allocation2 + $0x40] sm:$0xff]
    %v1134 = vld [vmem:[#allocation2 + $0x48] sm:$0xff]
    %1144 = vrot.lane.b32.xlu0 %v1126, 127
    %v1145 = vpop.permute.xlu0 %1144
    %1146 = vrot.lane.b32.xlu0 %v1127, 127
    %v1147 = vpop.permute.xlu0 %1146
    %1148 = vrot.lane.b32.xlu0 %v1128, 127
    %v1149 = vpop.permute.xlu0 %1148
    %1150 = vrot.lane.b32.xlu0 %v1129, 127
    %v1151 = vpop.permute.xlu0 %1150
    %1152 = vrot.lane.b32.xlu0 %v1130, 127
    %v1153 = vpop.permute.xlu0 %1152
    %1154 = vrot.lane.b32.xlu0 %v1131, 127
    %v1155 = vpop.permute.xlu0 %1154
    %1156 = vrot.lane.b32.xlu0 %v1132, 127
    %v1157 = vpop.permute.xlu0 %1156
    %1158 = vrot.lane.b32.xlu0 %v1133, 127
    %v1159 = vpop.permute.xlu0 %1158
    %1160 = vrot.lane.b32.xlu0 %v1134, 127
    %v1161 = vpop.permute.xlu0 %1160
    %vm1162 = vcmask 1039360
    %v1163 = vsel %vm1162, %v1145, %v1147
    %v1164 = vsel %vm1162, %v1147, %v1149
    %v1165 = vsel %vm1162, %v1149, %v1151
    %v1166 = vsel %vm1162, %v1151, %v1153
    %v1167 = vsel %vm1162, %v1153, %v1155
    %v1168 = vsel %vm1162, %v1155, %v1157
    %v1169 = vsel %vm1162, %v1157, %v1159
    %v1170 = vsel %vm1162, %v1159, %v1161
    %1180 = vst [vmem:[#allocation3 + $0x168] sm:$0xff] %v1163
    %1181 = vst [vmem:[#allocation3 + $0x170] sm:$0xff] %v1164
    %1182 = vst [vmem:[#allocation3 + $0x178] sm:$0xff] %v1165
    %1183 = vst [vmem:[#allocation3 + $0x180] sm:$0xff] %v1166
    %1184 = vst [vmem:[#allocation3 + $0x188] sm:$0xff] %v1167
    %1185 = vst [vmem:[#allocation3 + $0x190] sm:$0xff] %v1168
    %1186 = vst [vmem:[#allocation3 + $0x198] sm:$0xff] %v1169
    %1187 = vst [vmem:[#allocation3 + $0x1a0] sm:$0xff] %v1170
    %1188 = vst.msk [vmem:[#allocation3 + $0x1a8] sm:$0xff] %vm902, %v1161
    %v1189 = vld [vmem:[#allocation2 + $0x8] sm:$0xff]
    %v1190 = vld [vmem:[#allocation2 + $0x10] sm:$0xff]
    %v1191 = vld [vmem:[#allocation2 + $0x18] sm:$0xff]
    %v1192 = vld [vmem:[#allocation2 + $0x20] sm:$0xff]
    %v1193 = vld [vmem:[#allocation2 + $0x28] sm:$0xff]
    %v1194 = vld [vmem:[#allocation2 + $0x30] sm:$0xff]
    %v1195 = vld [vmem:[#allocation2 + $0x38] sm:$0xff]
    %v1196 = vld [vmem:[#allocation2 + $0x40] sm:$0xff]
    %v1197 = vld [vmem:[#allocation2 + $0x48] sm:$0xff]
    %1207 = vrot.lane.b32.xlu0 %v1189, 95
    %v1208 = vpop.permute.xlu0 %1207
    %1209 = vrot.lane.b32.xlu0 %v1190, 95
    %v1210 = vpop.permute.xlu0 %1209
    %1211 = vrot.lane.b32.xlu0 %v1191, 95
    %v1212 = vpop.permute.xlu0 %1211
    %1213 = vrot.lane.b32.xlu0 %v1192, 95
    %v1214 = vpop.permute.xlu0 %1213
    %1215 = vrot.lane.b32.xlu0 %v1193, 95
    %v1216 = vpop.permute.xlu0 %1215
    %1217 = vrot.lane.b32.xlu0 %v1194, 95
    %v1218 = vpop.permute.xlu0 %1217
    %1219 = vrot.lane.b32.xlu0 %v1195, 95
    %v1220 = vpop.permute.xlu0 %1219
    %1221 = vrot.lane.b32.xlu0 %v1196, 95
    %v1222 = vpop.permute.xlu0 %1221
    %1223 = vrot.lane.b32.xlu0 %v1197, 95
    %v1224 = vpop.permute.xlu0 %1223
    %vm1225 = vcmask 777216
    %v1226 = vsel %vm1225, %v1208, %v1210
    %v1227 = vsel %vm1225, %v1210, %v1212
    %v1228 = vsel %vm1225, %v1212, %v1214
    %v1229 = vsel %vm1225, %v1214, %v1216
    %v1230 = vsel %vm1225, %v1216, %v1218
    %v1231 = vsel %vm1225, %v1218, %v1220
    %v1232 = vsel %vm1225, %v1220, %v1222
    %v1233 = vsel %vm1225, %v1222, %v1224
    %1243 = vst [vmem:[#allocation3 + $0x1b0] sm:$0xff] %v1226
    %1244 = vst [vmem:[#allocation3 + $0x1b8] sm:$0xff] %v1227
    %1245 = vst [vmem:[#allocation3 + $0x1c0] sm:$0xff] %v1228
    %1246 = vst [vmem:[#allocation3 + $0x1c8] sm:$0xff] %v1229
    %1247 = vst [vmem:[#allocation3 + $0x1d0] sm:$0xff] %v1230
    %1248 = vst [vmem:[#allocation3 + $0x1d8] sm:$0xff] %v1231
    %1249 = vst [vmem:[#allocation3 + $0x1e0] sm:$0xff] %v1232
    %1250 = vst [vmem:[#allocation3 + $0x1e8] sm:$0xff] %v1233
    %1251 = vst.msk [vmem:[#allocation3 + $0x1f0] sm:$0xff] %vm902, %v1224
    %v1252 = vld [vmem:[#allocation2 + $0x8] sm:$0xff]
    %v1253 = vld [vmem:[#allocation2 + $0x10] sm:$0xff]
    %v1254 = vld [vmem:[#allocation2 + $0x18] sm:$0xff]
    %v1255 = vld [vmem:[#allocation2 + $0x20] sm:$0xff]
    %v1256 = vld [vmem:[#allocation2 + $0x28] sm:$0xff]
    %v1257 = vld [vmem:[#allocation2 + $0x30] sm:$0xff]
    %v1258 = vld [vmem:[#allocation2 + $0x38] sm:$0xff]
    %v1259 = vld [vmem:[#allocation2 + $0x40] sm:$0xff]
    %v1260 = vld [vmem:[#allocation2 + $0x48] sm:$0xff]
    %1270 = vrot.lane.b32.xlu0 %v1252, 94
    %v1271 = vpop.permute.xlu0 %1270
    %1272 = vrot.lane.b32.xlu0 %v1253, 94
    %v1273 = vpop.permute.xlu0 %1272
    %1274 = vrot.lane.b32.xlu0 %v1254, 94
    %v1275 = vpop.permute.xlu0 %1274
    %1276 = vrot.lane.b32.xlu0 %v1255, 94
    %v1277 = vpop.permute.xlu0 %1276
    %1278 = vrot.lane.b32.xlu0 %v1256, 94
    %v1279 = vpop.permute.xlu0 %1278
    %1280 = vrot.lane.b32.xlu0 %v1257, 94
    %v1281 = vpop.permute.xlu0 %1280
    %1282 = vrot.lane.b32.xlu0 %v1258, 94
    %v1283 = vpop.permute.xlu0 %1282
    %1284 = vrot.lane.b32.xlu0 %v1259, 94
    %v1285 = vpop.permute.xlu0 %1284
    %1286 = vrot.lane.b32.xlu0 %v1260, 94
    %v1287 = vpop.permute.xlu0 %1286
    %vm1288 = vcmask 769024
    %v1289 = vsel %vm1288, %v1271, %v1273
    %v1290 = vsel %vm1288, %v1273, %v1275
    %v1291 = vsel %vm1288, %v1275, %v1277
    %v1292 = vsel %vm1288, %v1277, %v1279
    %v1293 = vsel %vm1288, %v1279, %v1281
    %v1294 = vsel %vm1288, %v1281, %v1283
    %v1295 = vsel %vm1288, %v1283, %v1285
    %v1296 = vsel %vm1288, %v1285, %v1287
    %1306 = vst [vmem:[#allocation3 + $0x1f8] sm:$0xff] %v1289
    %1307 = vst [vmem:[#allocation3 + $0x200] sm:$0xff] %v1290
    %1308 = vst [vmem:[#allocation3 + $0x208] sm:$0xff] %v1291
    %1309 = vst [vmem:[#allocation3 + $0x210] sm:$0xff] %v1292
    %1310 = vst [vmem:[#allocation3 + $0x218] sm:$0xff] %v1293
    %1311 = vst [vmem:[#allocation3 + $0x220] sm:$0xff] %v1294
    %1312 = vst [vmem:[#allocation3 + $0x228] sm:$0xff] %v1295
    %1313 = vst [vmem:[#allocation3 + $0x230] sm:$0xff] %v1296
    %1314 = vst.msk [vmem:[#allocation3 + $0x238] sm:$0xff] %vm902, %v1287
    %v1315 = vld [vmem:[#allocation2 + $0x8] sm:$0xff]
    %v1316 = vld [vmem:[#allocation2 + $0x10] sm:$0xff]
    %v1317 = vld [vmem:[#allocation2 + $0x18] sm:$0xff]
    %v1318 = vld [vmem:[#allocation2 + $0x20] sm:$0xff]
    %v1319 = vld [vmem:[#allocation2 + $0x28] sm:$0xff]
    %v1320 = vld [vmem:[#allocation2 + $0x30] sm:$0xff]
    %v1321 = vld [vmem:[#allocation2 + $0x38] sm:$0xff]
    %v1322 = vld [vmem:[#allocation2 + $0x40] sm:$0xff]
    %v1323 = vld [vmem:[#allocation2 + $0x48] sm:$0xff]
    %1333 = vrot.lane.b32.xlu0 %v1315, 93
    %v1334 = vpop.permute.xlu0 %1333
    %1335 = vrot.lane.b32.xlu0 %v1316, 93
    %v1336 = vpop.permute.xlu0 %1335
    %1337 = vrot.lane.b32.xlu0 %v1317, 93
    %v1338 = vpop.permute.xlu0 %1337
    %1339 = vrot.lane.b32.xlu0 %v1318, 93
    %v1340 = vpop.permute.xlu0 %1339
    %1341 = vrot.lane.b32.xlu0 %v1319, 93
    %v1342 = vpop.permute.xlu0 %1341
    %1343 = vrot.lane.b32.xlu0 %v1320, 93
    %v1344 = vpop.permute.xlu0 %1343
    %1345 = vrot.lane.b32.xlu0 %v1321, 93
    %v1346 = vpop.permute.xlu0 %1345
    %1347 = vrot.lane.b32.xlu0 %v1322, 93
    %v1348 = vpop.permute.xlu0 %1347
    %1349 = vrot.lane.b32.xlu0 %v1323, 93
    %v1350 = vpop.permute.xlu0 %1349
    %vm1351 = vcmask 760832
    %v1352 = vsel %vm1351, %v1334, %v1336
    %v1353 = vsel %vm1351, %v1336, %v1338
    %v1354 = vsel %vm1351, %v1338, %v1340
    %v1355 = vsel %vm1351, %v1340, %v1342
    %v1356 = vsel %vm1351, %v1342, %v1344
    %v1357 = vsel %vm1351, %v1344, %v1346
    %v1358 = vsel %vm1351, %v1346, %v1348
    %v1359 = vsel %vm1351, %v1348, %v1350
    %1369 = vst [vmem:[#allocation3 + $0x240] sm:$0xff] %v1352
    %1370 = vst [vmem:[#allocation3 + $0x248] sm:$0xff] %v1353
    %1371 = vst [vmem:[#allocation3 + $0x250] sm:$0xff] %v1354
    %1372 = vst [vmem:[#allocation3 + $0x258] sm:$0xff] %v1355
    %1373 = vst [vmem:[#allocation3 + $0x260] sm:$0xff] %v1356
    %1374 = vst [vmem:[#allocation3 + $0x268] sm:$0xff] %v1357
    %1375 = vst [vmem:[#allocation3 + $0x270] sm:$0xff] %v1358
    %1376 = vst [vmem:[#allocation3 + $0x278] sm:$0xff] %v1359
    %1377 = vst.msk [vmem:[#allocation3 + $0x280] sm:$0xff] %vm902, %v1350
    %v1378 = vld [vmem:[#allocation9] sm:$0xff]
    %v1379 = vld [vmem:[#allocation3] sm:$0xff]
    %v1380 = vld [vmem:[#allocation3 + $0x8] sm:$0xff]
    %v1381 = vld [vmem:[#allocation3 + $0x10] sm:$0xff]
    %v1382 = vld [vmem:[#allocation3 + $0x18] sm:$0xff]
    %v1383 = vld [vmem:[#allocation3 + $0x20] sm:$0xff]
    %v1384 = vld [vmem:[#allocation3 + $0x28] sm:$0xff]
    %v1385 = vld [vmem:[#allocation3 + $0x30] sm:$0xff]
    %v1386 = vld [vmem:[#allocation3 + $0x38] sm:$0xff]
    %v1387 = vld [vmem:[#allocation3 + $0x40] sm:$0xff]
    %v1388 = vld [vmem:[#allocation3 + $0x48] sm:$0xff]
    %v1389 = vld [vmem:[#allocation3 + $0x50] sm:$0xff]
    %v1390 = vld [vmem:[#allocation3 + $0x58] sm:$0xff]
    %v1391 = vld [vmem:[#allocation3 + $0x60] sm:$0xff]
    %v1392 = vld [vmem:[#allocation3 + $0x68] sm:$0xff]
    %v1393 = vld [vmem:[#allocation3 + $0x70] sm:$0xff]
    %v1394 = vld [vmem:[#allocation3 + $0x78] sm:$0xff]
    %v1395 = vld [vmem:[#allocation3 + $0x80] sm:$0xff]
    %v1396 = vld [vmem:[#allocation3 + $0x88] sm:$0xff]
    %v1397 = vld [vmem:[#allocation3 + $0x90] sm:$0xff]
    %v1398 = vld [vmem:[#allocation3 + $0x98] sm:$0xff]
    %v1399 = vld [vmem:[#allocation3 + $0xa0] sm:$0xff]
    %v1400 = vld [vmem:[#allocation3 + $0xa8] sm:$0xff]
    %v1401 = vld [vmem:[#allocation3 + $0xb0] sm:$0xff]
    %v1402 = vld [vmem:[#allocation3 + $0xb8] sm:$0xff]
    %v1403 = vld [vmem:[#allocation3 + $0xc0] sm:$0xff]
    %v1404 = vld [vmem:[#allocation3 + $0xc8] sm:$0xff]
    %v1405 = vld [vmem:[#allocation3 + $0xd0] sm:$0xff]
    %v1406 = vld [vmem:[#allocation3 + $0xd8] sm:$0xff]
    %v1407 = vld [vmem:[#allocation3 + $0xe0] sm:$0xff]
    %v1408 = vld [vmem:[#allocation3 + $0xe8] sm:$0xff]
    %v1409 = vld [vmem:[#allocation3 + $0xf0] sm:$0xff]
    %v1410 = vld [vmem:[#allocation3 + $0xf8] sm:$0xff]
    %v1411 = vld [vmem:[#allocation3 + $0x100] sm:$0xff]
    %v1412 = vld [vmem:[#allocation3 + $0x108] sm:$0xff]
    %v1413 = vld [vmem:[#allocation3 + $0x110] sm:$0xff]
    %v1414 = vld [vmem:[#allocation3 + $0x118] sm:$0xff]
    %v1415 = vld [vmem:[#allocation3 + $0x120] sm:$0xff]
    %v1416 = vld [vmem:[#allocation3 + $0x128] sm:$0xff]
    %v1417 = vld [vmem:[#allocation3 + $0x130] sm:$0xff]
    %v1418 = vld [vmem:[#allocation3 + $0x138] sm:$0xff]
    %v1419 = vld [vmem:[#allocation3 + $0x140] sm:$0xff]
    %v1420 = vld [vmem:[#allocation3 + $0x148] sm:$0xff]
    %v1421 = vld [vmem:[#allocation3 + $0x150] sm:$0xff]
    %v1422 = vld [vmem:[#allocation3 + $0x158] sm:$0xff]
    %v1423 = vld [vmem:[#allocation3 + $0x160] sm:$0xff]
    %v1424 = vld [vmem:[#allocation3 + $0x168] sm:$0xff]
    %v1425 = vld [vmem:[#allocation3 + $0x170] sm:$0xff]
    %v1426 = vld [vmem:[#allocation3 + $0x178] sm:$0xff]
    %v1427 = vld [vmem:[#allocation3 + $0x180] sm:$0xff]
    %v1428 = vld [vmem:[#allocation3 + $0x188] sm:$0xff]
    %v1429 = vld [vmem:[#allocation3 + $0x190] sm:$0xff]
    %v1430 = vld [vmem:[#allocation3 + $0x198] sm:$0xff]
    %v1431 = vld [vmem:[#allocation3 + $0x1a0] sm:$0xff]
    %v1432 = vld [vmem:[#allocation3 + $0x1a8] sm:$0xff]
    %v1433 = vld [vmem:[#allocation3 + $0x1b0] sm:$0xff]
    %v1434 = vld [vmem:[#allocation3 + $0x1b8] sm:$0xff]
    %v1435 = vld [vmem:[#allocation3 + $0x1c0] sm:$0xff]
    %v1436 = vld [vmem:[#allocation3 + $0x1c8] sm:$0xff]
    %v1437 = vld [vmem:[#allocation3 + $0x1d0] sm:$0xff]
    %v1438 = vld [vmem:[#allocation3 + $0x1d8] sm:$0xff]
    %v1439 = vld [vmem:[#allocation3 + $0x1e0] sm:$0xff]
    %v1440 = vld [vmem:[#allocation3 + $0x1e8] sm:$0xff]
    %v1441 = vld [vmem:[#allocation3 + $0x1f0] sm:$0xff]
    %v1442 = vld [vmem:[#allocation3 + $0x1f8] sm:$0xff]
    %v1443 = vld [vmem:[#allocation3 + $0x200] sm:$0xff]
    %v1444 = vld [vmem:[#allocation3 + $0x208] sm:$0xff]
    %v1445 = vld [vmem:[#allocation3 + $0x210] sm:$0xff]
    %v1446 = vld [vmem:[#allocation3 + $0x218] sm:$0xff]
    %v1447 = vld [vmem:[#allocation3 + $0x220] sm:$0xff]
    %v1448 = vld [vmem:[#allocation3 + $0x228] sm:$0xff]
    %v1449 = vld [vmem:[#allocation3 + $0x230] sm:$0xff]
    %v1450 = vld [vmem:[#allocation3 + $0x238] sm:$0xff]
    %v1451 = vld [vmem:[#allocation3 + $0x240] sm:$0xff]
    %v1452 = vld [vmem:[#allocation3 + $0x248] sm:$0xff]
    %v1453 = vld [vmem:[#allocation3 + $0x250] sm:$0xff]
    %v1454 = vld [vmem:[#allocation3 + $0x258] sm:$0xff]
    %v1455 = vld [vmem:[#allocation3 + $0x260] sm:$0xff]
    %v1456 = vld [vmem:[#allocation3 + $0x268] sm:$0xff]
    %v1457 = vld [vmem:[#allocation3 + $0x270] sm:$0xff]
    %v1458 = vld [vmem:[#allocation3 + $0x278] sm:$0xff]
    %v1459 = vld [vmem:[#allocation3 + $0x280] sm:$0xff]
    %vm1460 = vcmask 588800
    %v1462 = vsel %vm1460, %v1378, 0
    %1464 = vmatpush.msra.mxu0 0.0
    %1465 = vmatpush.msra.mxu0 0.0
    %1466 = vmatpush.msra.mxu0 0.0
    %1467 = vmatpush.msra.mxu0 0.0
    %1468 = vmatpush.msra.mxu0 0.0
    %1469 = vmatpush.msra.mxu0 0.0
    %1470 = vmatpush.msra.mxu0 0.0
    %1471 = vmatpush.msra.mxu0 %v1451
    %1472 = vmatpush.msra.mxu0 %v1442
    %1473 = vmatpush.msra.mxu0 %v1433
    %1474 = vmatpush.msra.mxu0 %v1424
    %1475 = vmatpush.msra.mxu0 %v1415
    %1476 = vmatpush.msra.mxu0 %v1406
    %1477 = vmatpush.msra.mxu0 %v1397
    %1478 = vmatpush.msra.mxu0 %v1388
    %1479 = vmatpush.msra.mxu0 %v1379
    %1480 = vmatmul.f32.gmra.mxu0 %v1462
    %v1481 = vpop.f32.mrf.mxu0
    %v1482 = vadd.f32 0.0, %v1481
    %1483 = vdwg.mxu0
    %1484 = vmatpush.msra.mxu0 0.0
    %1485 = vmatpush.msra.mxu0 0.0
    %1486 = vmatpush.msra.mxu0 0.0
    %1487 = vmatpush.msra.mxu0 0.0
    %1488 = vmatpush.msra.mxu0 0.0
    %1489 = vmatpush.msra.mxu0 0.0
    %1490 = vmatpush.msra.mxu0 0.0
    %1491 = vmatpush.msra.mxu0 %v1452
    %1492 = vmatpush.msra.mxu0 %v1443
    %1493 = vmatpush.msra.mxu0 %v1434
    %1494 = vmatpush.msra.mxu0 %v1425
    %1495 = vmatpush.msra.mxu0 %v1416
    %1496 = vmatpush.msra.mxu0 %v1407
    %1497 = vmatpush.msra.mxu0 %v1398
    %1498 = vmatpush.msra.mxu0 %v1389
    %1499 = vmatpush.msra.mxu0 %v1380
    %1500 = vmatmul.f32.gmra.mxu0 %v1462
    %v1501 = vpop.f32.mrf.mxu0
    %v1502 = vadd.f32 0.0, %v1501
    %1503 = vdwg.mxu0
    %1504 = vmatpush.msra.mxu0 0.0
    %1505 = vmatpush.msra.mxu0 0.0
    %1506 = vmatpush.msra.mxu0 0.0
    %1507 = vmatpush.msra.mxu0 0.0
    %1508 = vmatpush.msra.mxu0 0.0
    %1509 = vmatpush.msra.mxu0 0.0
    %1510 = vmatpush.msra.mxu0 0.0
    %1511 = vmatpush.msra.mxu0 %v1453
    %1512 = vmatpush.msra.mxu0 %v1444
    %1513 = vmatpush.msra.mxu0 %v1435
    %1514 = vmatpush.msra.mxu0 %v1426
    %1515 = vmatpush.msra.mxu0 %v1417
    %1516 = vmatpush.msra.mxu0 %v1408
    %1517 = vmatpush.msra.mxu0 %v1399
    %1518 = vmatpush.msra.mxu0 %v1390
    %1519 = vmatpush.msra.mxu0 %v1381
    %1520 = vmatmul.f32.gmra.mxu0 %v1462
    %v1521 = vpop.f32.mrf.mxu0
    %v1522 = vadd.f32 0.0, %v1521
    %1523 = vdwg.mxu0
    %1524 = vmatpush.msra.mxu0 0.0
    %1525 = vmatpush.msra.mxu0 0.0
    %1526 = vmatpush.msra.mxu0 0.0
    %1527 = vmatpush.msra.mxu0 0.0
    %1528 = vmatpush.msra.mxu0 0.0
    %1529 = vmatpush.msra.mxu0 0.0
    %1530 = vmatpush.msra.mxu0 0.0
    %1531 = vmatpush.msra.mxu0 %v1454
    %1532 = vmatpush.msra.mxu0 %v1445
    %1533 = vmatpush.msra.mxu0 %v1436
    %1534 = vmatpush.msra.mxu0 %v1427
    %1535 = vmatpush.msra.mxu0 %v1418
    %1536 = vmatpush.msra.mxu0 %v1409
    %1537 = vmatpush.msra.mxu0 %v1400
    %1538 = vmatpush.msra.mxu0 %v1391
    %1539 = vmatpush.msra.mxu0 %v1382
    %1540 = vmatmul.f32.gmra.mxu0 %v1462
    %v1541 = vpop.f32.mrf.mxu0
    %v1542 = vadd.f32 0.0, %v1541
    %1543 = vdwg.mxu0
    %1544 = vmatpush.msra.mxu0 0.0
    %1545 = vmatpush.msra.mxu0 0.0
    %1546 = vmatpush.msra.mxu0 0.0
    %1547 = vmatpush.msra.mxu0 0.0
    %1548 = vmatpush.msra.mxu0 0.0
    %1549 = vmatpush.msra.mxu0 0.0
    %1550 = vmatpush.msra.mxu0 0.0
    %1551 = vmatpush.msra.mxu0 %v1455
    %1552 = vmatpush.msra.mxu0 %v1446
    %1553 = vmatpush.msra.mxu0 %v1437
    %1554 = vmatpush.msra.mxu0 %v1428
    %1555 = vmatpush.msra.mxu0 %v1419
    %1556 = vmatpush.msra.mxu0 %v1410
    %1557 = vmatpush.msra.mxu0 %v1401
    %1558 = vmatpush.msra.mxu0 %v1392
    %1559 = vmatpush.msra.mxu0 %v1383
    %1560 = vmatmul.f32.gmra.mxu0 %v1462
    %v1561 = vpop.f32.mrf.mxu0
    %v1562 = vadd.f32 0.0, %v1561
    %1563 = vdwg.mxu0
    %1564 = vmatpush.msra.mxu0 0.0
    %1565 = vmatpush.msra.mxu0 0.0
    %1566 = vmatpush.msra.mxu0 0.0
    %1567 = vmatpush.msra.mxu0 0.0
    %1568 = vmatpush.msra.mxu0 0.0
    %1569 = vmatpush.msra.mxu0 0.0
    %1570 = vmatpush.msra.mxu0 0.0
    %1571 = vmatpush.msra.mxu0 %v1456
    %1572 = vmatpush.msra.mxu0 %v1447
    %1573 = vmatpush.msra.mxu0 %v1438
    %1574 = vmatpush.msra.mxu0 %v1429
    %1575 = vmatpush.msra.mxu0 %v1420
    %1576 = vmatpush.msra.mxu0 %v1411
    %1577 = vmatpush.msra.mxu0 %v1402
    %1578 = vmatpush.msra.mxu0 %v1393
    %1579 = vmatpush.msra.mxu0 %v1384
    %1580 = vmatmul.f32.gmra.mxu0 %v1462
    %v1581 = vpop.f32.mrf.mxu0
    %v1582 = vadd.f32 0.0, %v1581
    %1583 = vdwg.mxu0
    %1584 = vmatpush.msra.mxu0 0.0
    %1585 = vmatpush.msra.mxu0 0.0
    %1586 = vmatpush.msra.mxu0 0.0
    %1587 = vmatpush.msra.mxu0 0.0
    %1588 = vmatpush.msra.mxu0 0.0
    %1589 = vmatpush.msra.mxu0 0.0
    %1590 = vmatpush.msra.mxu0 0.0
    %1591 = vmatpush.msra.mxu0 %v1457
    %1592 = vmatpush.msra.mxu0 %v1448
    %1593 = vmatpush.msra.mxu0 %v1439
    %1594 = vmatpush.msra.mxu0 %v1430
    %1595 = vmatpush.msra.mxu0 %v1421
    %1596 = vmatpush.msra.mxu0 %v1412
    %1597 = vmatpush.msra.mxu0 %v1403
    %1598 = vmatpush.msra.mxu0 %v1394
    %1599 = vmatpush.msra.mxu0 %v1385
    %1600 = vmatmul.f32.gmra.mxu0 %v1462
    %v1601 = vpop.f32.mrf.mxu0
    %v1602 = vadd.f32 0.0, %v1601
    %1603 = vdwg.mxu0
    %1604 = vmatpush.msra.mxu0 0.0
    %1605 = vmatpush.msra.mxu0 0.0
    %1606 = vmatpush.msra.mxu0 0.0
    %1607 = vmatpush.msra.mxu0 0.0
    %1608 = vmatpush.msra.mxu0 0.0
    %1609 = vmatpush.msra.mxu0 0.0
    %1610 = vmatpush.msra.mxu0 0.0
    %1611 = vmatpush.msra.mxu0 %v1458
    %1612 = vmatpush.msra.mxu0 %v1449
    %1613 = vmatpush.msra.mxu0 %v1440
    %1614 = vmatpush.msra.mxu0 %v1431
    %1615 = vmatpush.msra.mxu0 %v1422
    %1616 = vmatpush.msra.mxu0 %v1413
    %1617 = vmatpush.msra.mxu0 %v1404
    %1618 = vmatpush.msra.mxu0 %v1395
    %1619 = vmatpush.msra.mxu0 %v1386
    %1620 = vmatmul.f32.gmra.mxu0 %v1462
    %v1621 = vpop.f32.mrf.mxu0
    %v1622 = vadd.f32 0.0, %v1621
    %1623 = vdwg.mxu0
    %1624 = vmatpush.msra.mxu0 0.0
    %1625 = vmatpush.msra.mxu0 0.0
    %1626 = vmatpush.msra.mxu0 0.0
    %1627 = vmatpush.msra.mxu0 0.0
    %1628 = vmatpush.msra.mxu0 0.0
    %1629 = vmatpush.msra.mxu0 0.0
    %1630 = vmatpush.msra.mxu0 0.0
    %1631 = vmatpush.msra.mxu0 %v1459
    %1632 = vmatpush.msra.mxu0 %v1450
    %1633 = vmatpush.msra.mxu0 %v1441
    %1634 = vmatpush.msra.mxu0 %v1432
    %1635 = vmatpush.msra.mxu0 %v1423
    %1636 = vmatpush.msra.mxu0 %v1414
    %1637 = vmatpush.msra.mxu0 %v1405
    %1638 = vmatpush.msra.mxu0 %v1396
    %1639 = vmatpush.msra.mxu0 %v1387
    %1640 = vmatmul.f32.gmra.mxu0 %v1462
    %v1641 = vpop.f32.mrf.mxu0
    %v1642 = vadd.f32 0.0, %v1641
    %1643 = vdwg.mxu0
    %v1644 = vld [vmem:[%s3] sm:$0xff]
    %1646 = vset.pattern.permute.xlu0 0
    %1647 = vperm.xlu0 %1646, %v1644
    %v1648 = vpop.permute.xlu0 %1647
    %v1650 = vmul.f32 %v1482, %v1648
    %v1651 = vmul.f32 %v1502, %v1648
    %v1652 = vmul.f32 %v1522, %v1648
    %v1653 = vmul.f32 %v1542, %v1648
    %v1654 = vmul.f32 %v1562, %v1648
    %v1655 = vmul.f32 %v1582, %v1648
    %v1656 = vmul.f32 %v1602, %v1648
    %v1657 = vmul.f32 %v1622, %v1648
    %v1658 = vmul.f32 %v1642, %v1648
    %v1659 = vld [vmem:[%s4] sm:$0xff]
    %1661 = vset.pattern.permute.xlu0 0
    %1662 = vperm.xlu0 %1661, %v1659
    %v1663 = vpop.permute.xlu0 %1662
    %v1665 = vadd.f32 %v1650, %v1663
    %v1666 = vadd.f32 %v1651, %v1663
    %v1667 = vadd.f32 %v1652, %v1663
    %v1668 = vadd.f32 %v1653, %v1663
    %v1669 = vadd.f32 %v1654, %v1663
    %v1670 = vadd.f32 %v1655, %v1663
    %v1671 = vadd.f32 %v1656, %v1663
    %v1672 = vadd.f32 %v1657, %v1663
    %v1673 = vadd.f32 %v1658, %v1663
    %v1674 = vmax.f32 %v1665, 0.0
    %v1675 = vmax.f32 %v1666, 0.0
    %v1676 = vmax.f32 %v1667, 0.0
    %v1677 = vmax.f32 %v1668, 0.0
    %v1678 = vmax.f32 %v1669, 0.0
    %v1679 = vmax.f32 %v1670, 0.0
    %v1680 = vmax.f32 %v1671, 0.0
    %v1681 = vmax.f32 %v1672, 0.0
    %v1682 = vmax.f32 %v1673, 0.0
    %v1683 = vld [vmem:[#allocation12] sm:$0xff]
    %v1684 = vld [vmem:[#allocation12 + $0x8] sm:$0x1]
    %v1687 = vperm.slane %v1683, 0
    %v1688 = vperm.slane %v1683, 1
    %v1689 = vperm.slane %v1683, 2
    %v1690 = vperm.slane %v1683, 3
    %v1691 = vperm.slane %v1683, 4
    %v1692 = vperm.slane %v1683, 5
    %v1693 = vperm.slane %v1683, 6
    %v1694 = vperm.slane %v1683, 7
    %v1695 = vperm.slane %v1684, 0
    %v1705 = vmul.f32 %v1674, %v1687
    %v1706 = vmul.f32 %v1675, %v1688
    %v1707 = vmul.f32 %v1676, %v1689
    %v1708 = vmul.f32 %v1677, %v1690
    %v1709 = vmul.f32 %v1678, %v1691
    %v1710 = vmul.f32 %v1679, %v1692
    %v1711 = vmul.f32 %v1680, %v1693
    %v1712 = vmul.f32 %v1681, %v1694
    %v1713 = vmul.f32 %v1682, %v1695
    %1714 = vst [vmem:[#allocation2 + $0x8] sm:$0xff] %v1705
    %1715 = vst [vmem:[#allocation2 + $0x10] sm:$0xff] %v1706
    %1716 = vst [vmem:[#allocation2 + $0x18] sm:$0xff] %v1707
    %1717 = vst [vmem:[#allocation2 + $0x20] sm:$0xff] %v1708
    %1718 = vst [vmem:[#allocation2 + $0x28] sm:$0xff] %v1709
    %1719 = vst [vmem:[#allocation2 + $0x30] sm:$0xff] %v1710
    %1720 = vst [vmem:[#allocation2 + $0x38] sm:$0xff] %v1711
    %1721 = vst [vmem:[#allocation2 + $0x40] sm:$0xff] %v1712
    %1722 = vst.msk [vmem:[#allocation2 + $0x48] sm:$0xff] %vm902, %v1713
    %v1723 = vld [vmem:[#allocation2] sm:$0xff]
    %v1724 = vld [vmem:[#allocation2 + $0x8] sm:$0xff]
    %v1725 = vld [vmem:[#allocation2 + $0x10] sm:$0xff]
    %v1726 = vld [vmem:[#allocation2 + $0x18] sm:$0xff]
    %v1727 = vld [vmem:[#allocation2 + $0x20] sm:$0xff]
    %v1728 = vld [vmem:[#allocation2 + $0x28] sm:$0xff]
    %v1729 = vld [vmem:[#allocation2 + $0x30] sm:$0xff]
    %v1730 = vld [vmem:[#allocation2 + $0x38] sm:$0xff]
    %v1731 = vld [vmem:[#allocation2 + $0x40] sm:$0xff]
    %v1732 = vld [vmem:[#allocation2 + $0x48] sm:$0xff]
    %1743 = vrot.lane.b32.xlu0 %v1723, 35
    %v1744 = vpop.permute.xlu0 %1743
    %1745 = vrot.lane.b32.xlu0 %v1724, 35
    %v1746 = vpop.permute.xlu0 %1745
    %1747 = vrot.lane.b32.xlu0 %v1725, 35
    %v1748 = vpop.permute.xlu0 %1747
    %1749 = vrot.lane.b32.xlu0 %v1726, 35
    %v1750 = vpop.permute.xlu0 %1749
    %1751 = vrot.lane.b32.xlu0 %v1727, 35
    %v1752 = vpop.permute.xlu0 %1751
    %1753 = vrot.lane.b32.xlu0 %v1728, 35
    %v1754 = vpop.permute.xlu0 %1753
    %1755 = vrot.lane.b32.xlu0 %v1729, 35
    %v1756 = vpop.permute.xlu0 %1755
    %1757 = vrot.lane.b32.xlu0 %v1730, 35
    %v1758 = vpop.permute.xlu0 %1757
    %1759 = vrot.lane.b32.xlu0 %v1731, 35
    %v1760 = vpop.permute.xlu0 %1759
    %1761 = vrot.lane.b32.xlu0 %v1732, 35
    %v1762 = vpop.permute.xlu0 %1761
    %v1763 = vsel %vm875, %v1744, %v1746
    %v1764 = vsel %vm875, %v1746, %v1748
    %v1765 = vsel %vm875, %v1748, %v1750
    %v1766 = vsel %vm875, %v1750, %v1752
    %v1767 = vsel %vm875, %v1752, %v1754
    %v1768 = vsel %vm875, %v1754, %v1756
    %v1769 = vsel %vm875, %v1756, %v1758
    %v1770 = vsel %vm875, %v1758, %v1760
    %v1771 = vsel %vm875, %v1760, %v1762
    %1781 = vst [vmem:[#allocation3] sm:$0xff] %v1763
    %1782 = vst [vmem:[#allocation3 + $0x8] sm:$0xff] %v1764
    %1783 = vst [vmem:[#allocation3 + $0x10] sm:$0xff] %v1765
    %1784 = vst [vmem:[#allocation3 + $0x18] sm:$0xff] %v1766
    %1785 = vst [vmem:[#allocation3 + $0x20] sm:$0xff] %v1767
    %1786 = vst [vmem:[#allocation3 + $0x28] sm:$0xff] %v1768
    %1787 = vst [vmem:[#allocation3 + $0x30] sm:$0xff] %v1769
    %1788 = vst [vmem:[#allocation3 + $0x38] sm:$0xff] %v1770
    %1789 = vst.msk [vmem:[#allocation3 + $0x40] sm:$0xff] %vm902, %v1771
    %v1790 = vld [vmem:[#allocation2] sm:$0xff]
    %v1791 = vld [vmem:[#allocation2 + $0x8] sm:$0xff]
    %v1792 = vld [vmem:[#allocation2 + $0x10] sm:$0xff]
    %v1793 = vld [vmem:[#allocation2 + $0x18] sm:$0xff]
    %v1794 = vld [vmem:[#allocation2 + $0x20] sm:$0xff]
    %v1795 = vld [vmem:[#allocation2 + $0x28] sm:$0xff]
    %v1796 = vld [vmem:[#allocation2 + $0x30] sm:$0xff]
    %v1797 = vld [vmem:[#allocation2 + $0x38] sm:$0xff]
    %v1798 = vld [vmem:[#allocation2 + $0x40] sm:$0xff]
    %v1799 = vld [vmem:[#allocation2 + $0x48] sm:$0xff]
    %1810 = vrot.lane.b32.xlu0 %v1790, 34
    %v1811 = vpop.permute.xlu0 %1810
    %1812 = vrot.lane.b32.xlu0 %v1791, 34
    %v1813 = vpop.permute.xlu0 %1812
    %1814 = vrot.lane.b32.xlu0 %v1792, 34
    %v1815 = vpop.permute.xlu0 %1814
    %1816 = vrot.lane.b32.xlu0 %v1793, 34
    %v1817 = vpop.permute.xlu0 %1816
    %1818 = vrot.lane.b32.xlu0 %v1794, 34
    %v1819 = vpop.permute.xlu0 %1818
    %1820 = vrot.lane.b32.xlu0 %v1795, 34
    %v1821 = vpop.permute.xlu0 %1820
    %1822 = vrot.lane.b32.xlu0 %v1796, 34
    %v1823 = vpop.permute.xlu0 %1822
    %1824 = vrot.lane.b32.xlu0 %v1797, 34
    %v1825 = vpop.permute.xlu0 %1824
    %1826 = vrot.lane.b32.xlu0 %v1798, 34
    %v1827 = vpop.permute.xlu0 %1826
    %1828 = vrot.lane.b32.xlu0 %v1799, 34
    %v1829 = vpop.permute.xlu0 %1828
    %v1830 = vsel %vm944, %v1811, %v1813
    %v1831 = vsel %vm944, %v1813, %v1815
    %v1832 = vsel %vm944, %v1815, %v1817
    %v1833 = vsel %vm944, %v1817, %v1819
    %v1834 = vsel %vm944, %v1819, %v1821
    %v1835 = vsel %vm944, %v1821, %v1823
    %v1836 = vsel %vm944, %v1823, %v1825
    %v1837 = vsel %vm944, %v1825, %v1827
    %v1838 = vsel %vm944, %v1827, %v1829
    %1848 = vst [vmem:[#allocation3 + $0x48] sm:$0xff] %v1830
    %1849 = vst [vmem:[#allocation3 + $0x50] sm:$0xff] %v1831
    %1850 = vst [vmem:[#allocation3 + $0x58] sm:$0xff] %v1832
    %1851 = vst [vmem:[#allocation3 + $0x60] sm:$0xff] %v1833
    %1852 = vst [vmem:[#allocation3 + $0x68] sm:$0xff] %v1834
    %1853 = vst [vmem:[#allocation3 + $0x70] sm:$0xff] %v1835
    %1854 = vst [vmem:[#allocation3 + $0x78] sm:$0xff] %v1836
    %1855 = vst [vmem:[#allocation3 + $0x80] sm:$0xff] %v1837
    %1856 = vst.msk [vmem:[#allocation3 + $0x88] sm:$0xff] %vm902, %v1838
    %v1857 = vld [vmem:[#allocation2] sm:$0xff]
    %v1858 = vld [vmem:[#allocation2 + $0x8] sm:$0xff]
    %v1859 = vld [vmem:[#allocation2 + $0x10] sm:$0xff]
    %v1860 = vld [vmem:[#allocation2 + $0x18] sm:$0xff]
    %v1861 = vld [vmem:[#allocation2 + $0x20] sm:$0xff]
    %v1862 = vld [vmem:[#allocation2 + $0x28] sm:$0xff]
    %v1863 = vld [vmem:[#allocation2 + $0x30] sm:$0xff]
    %v1864 = vld [vmem:[#allocation2 + $0x38] sm:$0xff]
    %v1865 = vld [vmem:[#allocation2 + $0x40] sm:$0xff]
    %v1866 = vld [vmem:[#allocation2 + $0x48] sm:$0xff]
    %1877 = vrot.lane.b32.xlu0 %v1857, 33
    %v1878 = vpop.permute.xlu0 %1877
    %1879 = vrot.lane.b32.xlu0 %v1858, 33
    %v1880 = vpop.permute.xlu0 %1879
    %1881 = vrot.lane.b32.xlu0 %v1859, 33
    %v1882 = vpop.permute.xlu0 %1881
    %1883 = vrot.lane.b32.xlu0 %v1860, 33
    %v1884 = vpop.permute.xlu0 %1883
    %1885 = vrot.lane.b32.xlu0 %v1861, 33
    %v1886 = vpop.permute.xlu0 %1885
    %1887 = vrot.lane.b32.xlu0 %v1862, 33
    %v1888 = vpop.permute.xlu0 %1887
    %1889 = vrot.lane.b32.xlu0 %v1863, 33
    %v1890 = vpop.permute.xlu0 %1889
    %1891 = vrot.lane.b32.xlu0 %v1864, 33
    %v1892 = vpop.permute.xlu0 %1891
    %1893 = vrot.lane.b32.xlu0 %v1865, 33
    %v1894 = vpop.permute.xlu0 %1893
    %1895 = vrot.lane.b32.xlu0 %v1866, 33
    %v1896 = vpop.permute.xlu0 %1895
    %v1897 = vsel %vm1012, %v1878, %v1880
    %v1898 = vsel %vm1012, %v1880, %v1882
    %v1899 = vsel %vm1012, %v1882, %v1884
    %v1900 = vsel %vm1012, %v1884, %v1886
    %v1901 = vsel %vm1012, %v1886, %v1888
    %v1902 = vsel %vm1012, %v1888, %v1890
    %v1903 = vsel %vm1012, %v1890, %v1892
    %v1904 = vsel %vm1012, %v1892, %v1894
    %v1905 = vsel %vm1012, %v1894, %v1896
    %1915 = vst [vmem:[#allocation3 + $0x90] sm:$0xff] %v1897
    %1916 = vst [vmem:[#allocation3 + $0x98] sm:$0xff] %v1898
    %1917 = vst [vmem:[#allocation3 + $0xa0] sm:$0xff] %v1899
    %1918 = vst [vmem:[#allocation3 + $0xa8] sm:$0xff] %v1900
    %1919 = vst [vmem:[#allocation3 + $0xb0] sm:$0xff] %v1901
    %1920 = vst [vmem:[#allocation3 + $0xb8] sm:$0xff] %v1902
    %1921 = vst [vmem:[#allocation3 + $0xc0] sm:$0xff] %v1903
    %1922 = vst [vmem:[#allocation3 + $0xc8] sm:$0xff] %v1904
    %1923 = vst.msk [vmem:[#allocation3 + $0xd0] sm:$0xff] %vm902, %v1905
    %v1924 = vld [vmem:[#allocation2] sm:$0xff]
    %v1925 = vld [vmem:[#allocation2 + $0x8] sm:$0xff]
    %v1926 = vld [vmem:[#allocation2 + $0x10] sm:$0xff]
    %v1927 = vld [vmem:[#allocation2 + $0x18] sm:$0xff]
    %v1928 = vld [vmem:[#allocation2 + $0x20] sm:$0xff]
    %v1929 = vld [vmem:[#allocation2 + $0x28] sm:$0xff]
    %v1930 = vld [vmem:[#allocation2 + $0x30] sm:$0xff]
    %v1931 = vld [vmem:[#allocation2 + $0x38] sm:$0xff]
    %v1932 = vld [vmem:[#allocation2 + $0x40] sm:$0xff]
    %v1933 = vld [vmem:[#allocation2 + $0x48] sm:$0xff]
    %1944 = vrot.lane.b32.xlu0 %v1924, 1
    %v1945 = vpop.permute.xlu0 %1944
    %1946 = vrot.lane.b32.xlu0 %v1925, 1
    %v1947 = vpop.permute.xlu0 %1946
    %1948 = vrot.lane.b32.xlu0 %v1926, 1
    %v1949 = vpop.permute.xlu0 %1948
    %1950 = vrot.lane.b32.xlu0 %v1927, 1
    %v1951 = vpop.permute.xlu0 %1950
    %1952 = vrot.lane.b32.xlu0 %v1928, 1
    %v1953 = vpop.permute.xlu0 %1952
    %1954 = vrot.lane.b32.xlu0 %v1929, 1
    %v1955 = vpop.permute.xlu0 %1954
    %1956 = vrot.lane.b32.xlu0 %v1930, 1
    %v1957 = vpop.permute.xlu0 %1956
    %1958 = vrot.lane.b32.xlu0 %v1931, 1
    %v1959 = vpop.permute.xlu0 %1958
    %1960 = vrot.lane.b32.xlu0 %v1932, 1
    %v1961 = vpop.permute.xlu0 %1960
    %1962 = vrot.lane.b32.xlu0 %v1933, 1
    %v1963 = vpop.permute.xlu0 %1962
    %v1964 = vsel %vm1080, %v1945, %v1947
    %v1965 = vsel %vm1080, %v1947, %v1949
    %v1966 = vsel %vm1080, %v1949, %v1951
    %v1967 = vsel %vm1080, %v1951, %v1953
    %v1968 = vsel %vm1080, %v1953, %v1955
    %v1969 = vsel %vm1080, %v1955, %v1957
    %v1970 = vsel %vm1080, %v1957, %v1959
    %v1971 = vsel %vm1080, %v1959, %v1961
    %v1972 = vsel %vm1080, %v1961, %v1963
    %1982 = vst [vmem:[#allocation3 + $0xd8] sm:$0xff] %v1964
    %1983 = vst [vmem:[#allocation3 + $0xe0] sm:$0xff] %v1965
    %1984 = vst [vmem:[#allocation3 + $0xe8] sm:$0xff] %v1966
    %1985 = vst [vmem:[#allocation3 + $0xf0] sm:$0xff] %v1967
    %1986 = vst [vmem:[#allocation3 + $0xf8] sm:$0xff] %v1968
    %1987 = vst [vmem:[#allocation3 + $0x100] sm:$0xff] %v1969
    %1988 = vst [vmem:[#allocation3 + $0x108] sm:$0xff] %v1970
    %1989 = vst [vmem:[#allocation3 + $0x110] sm:$0xff] %v1971
    %1990 = vst.msk [vmem:[#allocation3 + $0x118] sm:$0xff] %vm902, %v1972
    %v1991 = vld [vmem:[#allocation2 + $0x8] sm:$0xff]
    %v1992 = vld [vmem:[#allocation2 + $0x10] sm:$0xff]
    %v1993 = vld [vmem:[#allocation2 + $0x18] sm:$0xff]
    %v1994 = vld [vmem:[#allocation2 + $0x20] sm:$0xff]
    %v1995 = vld [vmem:[#allocation2 + $0x28] sm:$0xff]
    %v1996 = vld [vmem:[#allocation2 + $0x30] sm:$0xff]
    %v1997 = vld [vmem:[#allocation2 + $0x38] sm:$0xff]
    %v1998 = vld [vmem:[#allocation2 + $0x40] sm:$0xff]
    %v1999 = vld [vmem:[#allocation2 + $0x48] sm:$0xff]
    %2000 = vst [vmem:[#allocation3 + $0x120] sm:$0xff] %v1991
    %2001 = vst [vmem:[#allocation3 + $0x128] sm:$0xff] %v1992
    %2002 = vst [vmem:[#allocation3 + $0x130] sm:$0xff] %v1993
    %2003 = vst [vmem:[#allocation3 + $0x138] sm:$0xff] %v1994
    %2004 = vst [vmem:[#allocation3 + $0x140] sm:$0xff] %v1995
    %2005 = vst [vmem:[#allocation3 + $0x148] sm:$0xff] %v1996
    %2006 = vst [vmem:[#allocation3 + $0x150] sm:$0xff] %v1997
    %2007 = vst [vmem:[#allocation3 + $0x158] sm:$0xff] %v1998
    %2008 = vst.msk [vmem:[#allocation3 + $0x160] sm:$0xff] %vm902, %v1999
    %v2009 = vld [vmem:[#allocation2 + $0x8] sm:$0xff]
    %v2010 = vld [vmem:[#allocation2 + $0x10] sm:$0xff]
    %v2011 = vld [vmem:[#allocation2 + $0x18] sm:$0xff]
    %v2012 = vld [vmem:[#allocation2 + $0x20] sm:$0xff]
    %v2013 = vld [vmem:[#allocation2 + $0x28] sm:$0xff]
    %v2014 = vld [vmem:[#allocation2 + $0x30] sm:$0xff]
    %v2015 = vld [vmem:[#allocation2 + $0x38] sm:$0xff]
    %v2016 = vld [vmem:[#allocation2 + $0x40] sm:$0xff]
    %v2017 = vld [vmem:[#allocation2 + $0x48] sm:$0xff]
    %2027 = vrot.lane.b32.xlu0 %v2009, 127
    %v2028 = vpop.permute.xlu0 %2027
    %2029 = vrot.lane.b32.xlu0 %v2010, 127
    %v2030 = vpop.permute.xlu0 %2029
    %2031 = vrot.lane.b32.xlu0 %v2011, 127
    %v2032 = vpop.permute.xlu0 %2031
    %2033 = vrot.lane.b32.xlu0 %v2012, 127
    %v2034 = vpop.permute.xlu0 %2033
    %2035 = vrot.lane.b32.xlu0 %v2013, 127
    %v2036 = vpop.permute.xlu0 %2035
    %2037 = vrot.lane.b32.xlu0 %v2014, 127
    %v2038 = vpop.permute.xlu0 %2037
    %2039 = vrot.lane.b32.xlu0 %v2015, 127
    %v2040 = vpop.permute.xlu0 %2039
    %2041 = vrot.lane.b32.xlu0 %v2016, 127
    %v2042 = vpop.permute.xlu0 %2041
    %2043 = vrot.lane.b32.xlu0 %v2017, 127
    %v2044 = vpop.permute.xlu0 %2043
    %v2045 = vsel %vm1162, %v2028, %v2030
    %v2046 = vsel %vm1162, %v2030, %v2032
    %v2047 = vsel %vm1162, %v2032, %v2034
    %v2048 = vsel %vm1162, %v2034, %v2036
    %v2049 = vsel %vm1162, %v2036, %v2038
    %v2050 = vsel %vm1162, %v2038, %v2040
    %v2051 = vsel %vm1162, %v2040, %v2042
    %v2052 = vsel %vm1162, %v2042, %v2044
    %2062 = vst [vmem:[#allocation3 + $0x168] sm:$0xff] %v2045
    %2063 = vst [vmem:[#allocation3 + $0x170] sm:$0xff] %v2046
    %2064 = vst [vmem:[#allocation3 + $0x178] sm:$0xff] %v2047
    %2065 = vst [vmem:[#allocation3 + $0x180] sm:$0xff] %v2048
    %2066 = vst [vmem:[#allocation3 + $0x188] sm:$0xff] %v2049
    %2067 = vst [vmem:[#allocation3 + $0x190] sm:$0xff] %v2050
    %2068 = vst [vmem:[#allocation3 + $0x198] sm:$0xff] %v2051
    %2069 = vst [vmem:[#allocation3 + $0x1a0] sm:$0xff] %v2052
    %2070 = vst.msk [vmem:[#allocation3 + $0x1a8] sm:$0xff] %vm902, %v2044
    %v2071 = vld [vmem:[#allocation2 + $0x8] sm:$0xff]
    %v2072 = vld [vmem:[#allocation2 + $0x10] sm:$0xff]
    %v2073 = vld [vmem:[#allocation2 + $0x18] sm:$0xff]
    %v2074 = vld [vmem:[#allocation2 + $0x20] sm:$0xff]
    %v2075 = vld [vmem:[#allocation2 + $0x28] sm:$0xff]
    %v2076 = vld [vmem:[#allocation2 + $0x30] sm:$0xff]
    %v2077 = vld [vmem:[#allocation2 + $0x38] sm:$0xff]
    %v2078 = vld [vmem:[#allocation2 + $0x40] sm:$0xff]
    %v2079 = vld [vmem:[#allocation2 + $0x48] sm:$0xff]
    %2089 = vrot.lane.b32.xlu0 %v2071, 95
    %v2090 = vpop.permute.xlu0 %2089
    %2091 = vrot.lane.b32.xlu0 %v2072, 95
    %v2092 = vpop.permute.xlu0 %2091
    %2093 = vrot.lane.b32.xlu0 %v2073, 95
    %v2094 = vpop.permute.xlu0 %2093
    %2095 = vrot.lane.b32.xlu0 %v2074, 95
    %v2096 = vpop.permute.xlu0 %2095
    %2097 = vrot.lane.b32.xlu0 %v2075, 95
    %v2098 = vpop.permute.xlu0 %2097
    %2099 = vrot.lane.b32.xlu0 %v2076, 95
    %v2100 = vpop.permute.xlu0 %2099
    %2101 = vrot.lane.b32.xlu0 %v2077, 95
    %v2102 = vpop.permute.xlu0 %2101
    %2103 = vrot.lane.b32.xlu0 %v2078, 95
    %v2104 = vpop.permute.xlu0 %2103
    %2105 = vrot.lane.b32.xlu0 %v2079, 95
    %v2106 = vpop.permute.xlu0 %2105
    %v2107 = vsel %vm1225, %v2090, %v2092
    %v2108 = vsel %vm1225, %v2092, %v2094
    %v2109 = vsel %vm1225, %v2094, %v2096
    %v2110 = vsel %vm1225, %v2096, %v2098
    %v2111 = vsel %vm1225, %v2098, %v2100
    %v2112 = vsel %vm1225, %v2100, %v2102
    %v2113 = vsel %vm1225, %v2102, %v2104
    %v2114 = vsel %vm1225, %v2104, %v2106
    %2124 = vst [vmem:[#allocation3 + $0x1b0] sm:$0xff] %v2107
    %2125 = vst [vmem:[#allocation3 + $0x1b8] sm:$0xff] %v2108
    %2126 = vst [vmem:[#allocation3 + $0x1c0] sm:$0xff] %v2109
    %2127 = vst [vmem:[#allocation3 + $0x1c8] sm:$0xff] %v2110
    %2128 = vst [vmem:[#allocation3 + $0x1d0] sm:$0xff] %v2111
    %2129 = vst [vmem:[#allocation3 + $0x1d8] sm:$0xff] %v2112
    %2130 = vst [vmem:[#allocation3 + $0x1e0] sm:$0xff] %v2113
    %2131 = vst [vmem:[#allocation3 + $0x1e8] sm:$0xff] %v2114
    %2132 = vst.msk [vmem:[#allocation3 + $0x1f0] sm:$0xff] %vm902, %v2106
    %v2133 = vld [vmem:[#allocation2 + $0x8] sm:$0xff]
    %v2134 = vld [vmem:[#allocation2 + $0x10] sm:$0xff]
    %v2135 = vld [vmem:[#allocation2 + $0x18] sm:$0xff]
    %v2136 = vld [vmem:[#allocation2 + $0x20] sm:$0xff]
    %v2137 = vld [vmem:[#allocation2 + $0x28] sm:$0xff]
    %v2138 = vld [vmem:[#allocation2 + $0x30] sm:$0xff]
    %v2139 = vld [vmem:[#allocation2 + $0x38] sm:$0xff]
    %v2140 = vld [vmem:[#allocation2 + $0x40] sm:$0xff]
    %v2141 = vld [vmem:[#allocation2 + $0x48] sm:$0xff]
    %2151 = vrot.lane.b32.xlu0 %v2133, 94
    %v2152 = vpop.permute.xlu0 %2151
    %2153 = vrot.lane.b32.xlu0 %v2134, 94
    %v2154 = vpop.permute.xlu0 %2153
    %2155 = vrot.lane.b32.xlu0 %v2135, 94
    %v2156 = vpop.permute.xlu0 %2155
    %2157 = vrot.lane.b32.xlu0 %v2136, 94
    %v2158 = vpop.permute.xlu0 %2157
    %2159 = vrot.lane.b32.xlu0 %v2137, 94
    %v2160 = vpop.permute.xlu0 %2159
    %2161 = vrot.lane.b32.xlu0 %v2138, 94
    %v2162 = vpop.permute.xlu0 %2161
    %2163 = vrot.lane.b32.xlu0 %v2139, 94
    %v2164 = vpop.permute.xlu0 %2163
    %2165 = vrot.lane.b32.xlu0 %v2140, 94
    %v2166 = vpop.permute.xlu0 %2165
    %2167 = vrot.lane.b32.xlu0 %v2141, 94
    %v2168 = vpop.permute.xlu0 %2167
    %v2169 = vsel %vm1288, %v2152, %v2154
    %v2170 = vsel %vm1288, %v2154, %v2156
    %v2171 = vsel %vm1288, %v2156, %v2158
    %v2172 = vsel %vm1288, %v2158, %v2160
    %v2173 = vsel %vm1288, %v2160, %v2162
    %v2174 = vsel %vm1288, %v2162, %v2164
    %v2175 = vsel %vm1288, %v2164, %v2166
    %v2176 = vsel %vm1288, %v2166, %v2168
    %2186 = vst [vmem:[#allocation3 + $0x1f8] sm:$0xff] %v2169
    %2187 = vst [vmem:[#allocation3 + $0x200] sm:$0xff] %v2170
    %2188 = vst [vmem:[#allocation3 + $0x208] sm:$0xff] %v2171
    %2189 = vst [vmem:[#allocation3 + $0x210] sm:$0xff] %v2172
    %2190 = vst [vmem:[#allocation3 + $0x218] sm:$0xff] %v2173
    %2191 = vst [vmem:[#allocation3 + $0x220] sm:$0xff] %v2174
    %2192 = vst [vmem:[#allocation3 + $0x228] sm:$0xff] %v2175
    %2193 = vst [vmem:[#allocation3 + $0x230] sm:$0xff] %v2176
    %2194 = vst.msk [vmem:[#allocation3 + $0x238] sm:$0xff] %vm902, %v2168
    %v2195 = vld [vmem:[#allocation2 + $0x8] sm:$0xff]
    %v2196 = vld [vmem:[#allocation2 + $0x10] sm:$0xff]
    %v2197 = vld [vmem:[#allocation2 + $0x18] sm:$0xff]
    %v2198 = vld [vmem:[#allocation2 + $0x20] sm:$0xff]
    %v2199 = vld [vmem:[#allocation2 + $0x28] sm:$0xff]
    %v2200 = vld [vmem:[#allocation2 + $0x30] sm:$0xff]
    %v2201 = vld [vmem:[#allocation2 + $0x38] sm:$0xff]
    %v2202 = vld [vmem:[#allocation2 + $0x40] sm:$0xff]
    %v2203 = vld [vmem:[#allocation2 + $0x48] sm:$0xff]
    %2213 = vrot.lane.b32.xlu0 %v2195, 93
    %v2214 = vpop.permute.xlu0 %2213
    %2215 = vrot.lane.b32.xlu0 %v2196, 93
    %v2216 = vpop.permute.xlu0 %2215
    %2217 = vrot.lane.b32.xlu0 %v2197, 93
    %v2218 = vpop.permute.xlu0 %2217
    %2219 = vrot.lane.b32.xlu0 %v2198, 93
    %v2220 = vpop.permute.xlu0 %2219
    %2221 = vrot.lane.b32.xlu0 %v2199, 93
    %v2222 = vpop.permute.xlu0 %2221
    %2223 = vrot.lane.b32.xlu0 %v2200, 93
    %v2224 = vpop.permute.xlu0 %2223
    %2225 = vrot.lane.b32.xlu0 %v2201, 93
    %v2226 = vpop.permute.xlu0 %2225
    %2227 = vrot.lane.b32.xlu0 %v2202, 93
    %v2228 = vpop.permute.xlu0 %2227
    %2229 = vrot.lane.b32.xlu0 %v2203, 93
    %v2230 = vpop.permute.xlu0 %2229
    %v2231 = vsel %vm1351, %v2214, %v2216
    %v2232 = vsel %vm1351, %v2216, %v2218
    %v2233 = vsel %vm1351, %v2218, %v2220
    %v2234 = vsel %vm1351, %v2220, %v2222
    %v2235 = vsel %vm1351, %v2222, %v2224
    %v2236 = vsel %vm1351, %v2224, %v2226
    %v2237 = vsel %vm1351, %v2226, %v2228
    %v2238 = vsel %vm1351, %v2228, %v2230
    %2248 = vst [vmem:[#allocation3 + $0x240] sm:$0xff] %v2231
    %2249 = vst [vmem:[#allocation3 + $0x248] sm:$0xff] %v2232
    %2250 = vst [vmem:[#allocation3 + $0x250] sm:$0xff] %v2233
    %2251 = vst [vmem:[#allocation3 + $0x258] sm:$0xff] %v2234
    %2252 = vst [vmem:[#allocation3 + $0x260] sm:$0xff] %v2235
    %2253 = vst [vmem:[#allocation3 + $0x268] sm:$0xff] %v2236
    %2254 = vst [vmem:[#allocation3 + $0x270] sm:$0xff] %v2237
    %2255 = vst [vmem:[#allocation3 + $0x278] sm:$0xff] %v2238
    %2256 = vst.msk [vmem:[#allocation3 + $0x280] sm:$0xff] %vm902, %v2230
    %v2257 = vld [vmem:[#allocation10] sm:$0xff]
    %v2258 = vld [vmem:[#allocation3] sm:$0xff]
    %v2259 = vld [vmem:[#allocation3 + $0x8] sm:$0xff]
    %v2260 = vld [vmem:[#allocation3 + $0x10] sm:$0xff]
    %v2261 = vld [vmem:[#allocation3 + $0x18] sm:$0xff]
    %v2262 = vld [vmem:[#allocation3 + $0x20] sm:$0xff]
    %v2263 = vld [vmem:[#allocation3 + $0x28] sm:$0xff]
    %v2264 = vld [vmem:[#allocation3 + $0x30] sm:$0xff]
    %v2265 = vld [vmem:[#allocation3 + $0x38] sm:$0xff]
    %v2266 = vld [vmem:[#allocation3 + $0x40] sm:$0xff]
    %v2267 = vld [vmem:[#allocation3 + $0x48] sm:$0xff]
    %v2268 = vld [vmem:[#allocation3 + $0x50] sm:$0xff]
    %v2269 = vld [vmem:[#allocation3 + $0x58] sm:$0xff]
    %v2270 = vld [vmem:[#allocation3 + $0x60] sm:$0xff]
    %v2271 = vld [vmem:[#allocation3 + $0x68] sm:$0xff]
    %v2272 = vld [vmem:[#allocation3 + $0x70] sm:$0xff]
    %v2273 = vld [vmem:[#allocation3 + $0x78] sm:$0xff]
    %v2274 = vld [vmem:[#allocation3 + $0x80] sm:$0xff]
    %v2275 = vld [vmem:[#allocation3 + $0x88] sm:$0xff]
    %v2276 = vld [vmem:[#allocation3 + $0x90] sm:$0xff]
    %v2277 = vld [vmem:[#allocation3 + $0x98] sm:$0xff]
    %v2278 = vld [vmem:[#allocation3 + $0xa0] sm:$0xff]
    %v2279 = vld [vmem:[#allocation3 + $0xa8] sm:$0xff]
    %v2280 = vld [vmem:[#allocation3 + $0xb0] sm:$0xff]
    %v2281 = vld [vmem:[#allocation3 + $0xb8] sm:$0xff]
    %v2282 = vld [vmem:[#allocation3 + $0xc0] sm:$0xff]
    %v2283 = vld [vmem:[#allocation3 + $0xc8] sm:$0xff]
    %v2284 = vld [vmem:[#allocation3 + $0xd0] sm:$0xff]
    %v2285 = vld [vmem:[#allocation3 + $0xd8] sm:$0xff]
    %v2286 = vld [vmem:[#allocation3 + $0xe0] sm:$0xff]
    %v2287 = vld [vmem:[#allocation3 + $0xe8] sm:$0xff]
    %v2288 = vld [vmem:[#allocation3 + $0xf0] sm:$0xff]
    %v2289 = vld [vmem:[#allocation3 + $0xf8] sm:$0xff]
    %v2290 = vld [vmem:[#allocation3 + $0x100] sm:$0xff]
    %v2291 = vld [vmem:[#allocation3 + $0x108] sm:$0xff]
    %v2292 = vld [vmem:[#allocation3 + $0x110] sm:$0xff]
    %v2293 = vld [vmem:[#allocation3 + $0x118] sm:$0xff]
    %v2294 = vld [vmem:[#allocation3 + $0x120] sm:$0xff]
    %v2295 = vld [vmem:[#allocation3 + $0x128] sm:$0xff]
    %v2296 = vld [vmem:[#allocation3 + $0x130] sm:$0xff]
    %v2297 = vld [vmem:[#allocation3 + $0x138] sm:$0xff]
    %v2298 = vld [vmem:[#allocation3 + $0x140] sm:$0xff]
    %v2299 = vld [vmem:[#allocation3 + $0x148] sm:$0xff]
    %v2300 = vld [vmem:[#allocation3 + $0x150] sm:$0xff]
    %v2301 = vld [vmem:[#allocation3 + $0x158] sm:$0xff]
    %v2302 = vld [vmem:[#allocation3 + $0x160] sm:$0xff]
    %v2303 = vld [vmem:[#allocation3 + $0x168] sm:$0xff]
    %v2304 = vld [vmem:[#allocation3 + $0x170] sm:$0xff]
    %v2305 = vld [vmem:[#allocation3 + $0x178] sm:$0xff]
    %v2306 = vld [vmem:[#allocation3 + $0x180] sm:$0xff]
    %v2307 = vld [vmem:[#allocation3 + $0x188] sm:$0xff]
    %v2308 = vld [vmem:[#allocation3 + $0x190] sm:$0xff]
    %v2309 = vld [vmem:[#allocation3 + $0x198] sm:$0xff]
    %v2310 = vld [vmem:[#allocation3 + $0x1a0] sm:$0xff]
    %v2311 = vld [vmem:[#allocation3 + $0x1a8] sm:$0xff]
    %v2312 = vld [vmem:[#allocation3 + $0x1b0] sm:$0xff]
    %v2313 = vld [vmem:[#allocation3 + $0x1b8] sm:$0xff]
    %v2314 = vld [vmem:[#allocation3 + $0x1c0] sm:$0xff]
    %v2315 = vld [vmem:[#allocation3 + $0x1c8] sm:$0xff]
    %v2316 = vld [vmem:[#allocation3 + $0x1d0] sm:$0xff]
    %v2317 = vld [vmem:[#allocation3 + $0x1d8] sm:$0xff]
    %v2318 = vld [vmem:[#allocation3 + $0x1e0] sm:$0xff]
    %v2319 = vld [vmem:[#allocation3 + $0x1e8] sm:$0xff]
    %v2320 = vld [vmem:[#allocation3 + $0x1f0] sm:$0xff]
    %v2321 = vld [vmem:[#allocation3 + $0x1f8] sm:$0xff]
    %v2322 = vld [vmem:[#allocation3 + $0x200] sm:$0xff]
    %v2323 = vld [vmem:[#allocation3 + $0x208] sm:$0xff]
    %v2324 = vld [vmem:[#allocation3 + $0x210] sm:$0xff]
    %v2325 = vld [vmem:[#allocation3 + $0x218] sm:$0xff]
    %v2326 = vld [vmem:[#allocation3 + $0x220] sm:$0xff]
    %v2327 = vld [vmem:[#allocation3 + $0x228] sm:$0xff]
    %v2328 = vld [vmem:[#allocation3 + $0x230] sm:$0xff]
    %v2329 = vld [vmem:[#allocation3 + $0x238] sm:$0xff]
    %v2330 = vld [vmem:[#allocation3 + $0x240] sm:$0xff]
    %v2331 = vld [vmem:[#allocation3 + $0x248] sm:$0xff]
    %v2332 = vld [vmem:[#allocation3 + $0x250] sm:$0xff]
    %v2333 = vld [vmem:[#allocation3 + $0x258] sm:$0xff]
    %v2334 = vld [vmem:[#allocation3 + $0x260] sm:$0xff]
    %v2335 = vld [vmem:[#allocation3 + $0x268] sm:$0xff]
    %v2336 = vld [vmem:[#allocation3 + $0x270] sm:$0xff]
    %v2337 = vld [vmem:[#allocation3 + $0x278] sm:$0xff]
    %v2338 = vld [vmem:[#allocation3 + $0x280] sm:$0xff]
    %v2340 = vsel %vm1460, %v2257, 0
    %2342 = vmatpush.msra.mxu0 0.0
    %2343 = vmatpush.msra.mxu0 0.0
    %2344 = vmatpush.msra.mxu0 0.0
    %2345 = vmatpush.msra.mxu0 0.0
    %2346 = vmatpush.msra.mxu0 0.0
    %2347 = vmatpush.msra.mxu0 0.0
    %2348 = vmatpush.msra.mxu0 0.0
    %2349 = vmatpush.msra.mxu0 %v2330
    %2350 = vmatpush.msra.mxu0 %v2321
    %2351 = vmatpush.msra.mxu0 %v2312
    %2352 = vmatpush.msra.mxu0 %v2303
    %2353 = vmatpush.msra.mxu0 %v2294
    %2354 = vmatpush.msra.mxu0 %v2285
    %2355 = vmatpush.msra.mxu0 %v2276
    %2356 = vmatpush.msra.mxu0 %v2267
    %2357 = vmatpush.msra.mxu0 %v2258
    %2358 = vmatmul.f32.gmra.mxu0 %v2340
    %v2359 = vpop.f32.mrf.mxu0
    %v2360 = vadd.f32 0.0, %v2359
    %2361 = vdwg.mxu0
    %2362 = vmatpush.msra.mxu0 0.0
    %2363 = vmatpush.msra.mxu0 0.0
    %2364 = vmatpush.msra.mxu0 0.0
    %2365 = vmatpush.msra.mxu0 0.0
    %2366 = vmatpush.msra.mxu0 0.0
    %2367 = vmatpush.msra.mxu0 0.0
    %2368 = vmatpush.msra.mxu0 0.0
    %2369 = vmatpush.msra.mxu0 %v2331
    %2370 = vmatpush.msra.mxu0 %v2322
    %2371 = vmatpush.msra.mxu0 %v2313
    %2372 = vmatpush.msra.mxu0 %v2304
    %2373 = vmatpush.msra.mxu0 %v2295
    %2374 = vmatpush.msra.mxu0 %v2286
    %2375 = vmatpush.msra.mxu0 %v2277
    %2376 = vmatpush.msra.mxu0 %v2268
    %2377 = vmatpush.msra.mxu0 %v2259
    %2378 = vmatmul.f32.gmra.mxu0 %v2340
    %v2379 = vpop.f32.mrf.mxu0
    %v2380 = vadd.f32 0.0, %v2379
    %2381 = vdwg.mxu0
    %2382 = vmatpush.msra.mxu0 0.0
    %2383 = vmatpush.msra.mxu0 0.0
    %2384 = vmatpush.msra.mxu0 0.0
    %2385 = vmatpush.msra.mxu0 0.0
    %2386 = vmatpush.msra.mxu0 0.0
    %2387 = vmatpush.msra.mxu0 0.0
    %2388 = vmatpush.msra.mxu0 0.0
    %2389 = vmatpush.msra.mxu0 %v2332
    %2390 = vmatpush.msra.mxu0 %v2323
    %2391 = vmatpush.msra.mxu0 %v2314
    %2392 = vmatpush.msra.mxu0 %v2305
    %2393 = vmatpush.msra.mxu0 %v2296
    %2394 = vmatpush.msra.mxu0 %v2287
    %2395 = vmatpush.msra.mxu0 %v2278
    %2396 = vmatpush.msra.mxu0 %v2269
    %2397 = vmatpush.msra.mxu0 %v2260
    %2398 = vmatmul.f32.gmra.mxu0 %v2340
    %v2399 = vpop.f32.mrf.mxu0
    %v2400 = vadd.f32 0.0, %v2399
    %2401 = vdwg.mxu0
    %2402 = vmatpush.msra.mxu0 0.0
    %2403 = vmatpush.msra.mxu0 0.0
    %2404 = vmatpush.msra.mxu0 0.0
    %2405 = vmatpush.msra.mxu0 0.0
    %2406 = vmatpush.msra.mxu0 0.0
    %2407 = vmatpush.msra.mxu0 0.0
    %2408 = vmatpush.msra.mxu0 0.0
    %2409 = vmatpush.msra.mxu0 %v2333
    %2410 = vmatpush.msra.mxu0 %v2324
    %2411 = vmatpush.msra.mxu0 %v2315
    %2412 = vmatpush.msra.mxu0 %v2306
    %2413 = vmatpush.msra.mxu0 %v2297
    %2414 = vmatpush.msra.mxu0 %v2288
    %2415 = vmatpush.msra.mxu0 %v2279
    %2416 = vmatpush.msra.mxu0 %v2270
    %2417 = vmatpush.msra.mxu0 %v2261
    %2418 = vmatmul.f32.gmra.mxu0 %v2340
    %v2419 = vpop.f32.mrf.mxu0
    %v2420 = vadd.f32 0.0, %v2419
    %2421 = vdwg.mxu0
    %2422 = vmatpush.msra.mxu0 0.0
    %2423 = vmatpush.msra.mxu0 0.0
    %2424 = vmatpush.msra.mxu0 0.0
    %2425 = vmatpush.msra.mxu0 0.0
    %2426 = vmatpush.msra.mxu0 0.0
    %2427 = vmatpush.msra.mxu0 0.0
    %2428 = vmatpush.msra.mxu0 0.0
    %2429 = vmatpush.msra.mxu0 %v2334
    %2430 = vmatpush.msra.mxu0 %v2325
    %2431 = vmatpush.msra.mxu0 %v2316
    %2432 = vmatpush.msra.mxu0 %v2307
    %2433 = vmatpush.msra.mxu0 %v2298
    %2434 = vmatpush.msra.mxu0 %v2289
    %2435 = vmatpush.msra.mxu0 %v2280
    %2436 = vmatpush.msra.mxu0 %v2271
    %2437 = vmatpush.msra.mxu0 %v2262
    %2438 = vmatmul.f32.gmra.mxu0 %v2340
    %v2439 = vpop.f32.mrf.mxu0
    %v2440 = vadd.f32 0.0, %v2439
    %2441 = vdwg.mxu0
    %2442 = vmatpush.msra.mxu0 0.0
    %2443 = vmatpush.msra.mxu0 0.0
    %2444 = vmatpush.msra.mxu0 0.0
    %2445 = vmatpush.msra.mxu0 0.0
    %2446 = vmatpush.msra.mxu0 0.0
    %2447 = vmatpush.msra.mxu0 0.0
    %2448 = vmatpush.msra.mxu0 0.0
    %2449 = vmatpush.msra.mxu0 %v2335
    %2450 = vmatpush.msra.mxu0 %v2326
    %2451 = vmatpush.msra.mxu0 %v2317
    %2452 = vmatpush.msra.mxu0 %v2308
    %2453 = vmatpush.msra.mxu0 %v2299
    %2454 = vmatpush.msra.mxu0 %v2290
    %2455 = vmatpush.msra.mxu0 %v2281
    %2456 = vmatpush.msra.mxu0 %v2272
    %2457 = vmatpush.msra.mxu0 %v2263
    %2458 = vmatmul.f32.gmra.mxu0 %v2340
    %v2459 = vpop.f32.mrf.mxu0
    %v2460 = vadd.f32 0.0, %v2459
    %2461 = vdwg.mxu0
    %2462 = vmatpush.msra.mxu0 0.0
    %2463 = vmatpush.msra.mxu0 0.0
    %2464 = vmatpush.msra.mxu0 0.0
    %2465 = vmatpush.msra.mxu0 0.0
    %2466 = vmatpush.msra.mxu0 0.0
    %2467 = vmatpush.msra.mxu0 0.0
    %2468 = vmatpush.msra.mxu0 0.0
    %2469 = vmatpush.msra.mxu0 %v2336
    %2470 = vmatpush.msra.mxu0 %v2327
    %2471 = vmatpush.msra.mxu0 %v2318
    %2472 = vmatpush.msra.mxu0 %v2309
    %2473 = vmatpush.msra.mxu0 %v2300
    %2474 = vmatpush.msra.mxu0 %v2291
    %2475 = vmatpush.msra.mxu0 %v2282
    %2476 = vmatpush.msra.mxu0 %v2273
    %2477 = vmatpush.msra.mxu0 %v2264
    %2478 = vmatmul.f32.gmra.mxu0 %v2340
    %v2479 = vpop.f32.mrf.mxu0
    %v2480 = vadd.f32 0.0, %v2479
    %2481 = vdwg.mxu0
    %2482 = vmatpush.msra.mxu0 0.0
    %2483 = vmatpush.msra.mxu0 0.0
    %2484 = vmatpush.msra.mxu0 0.0
    %2485 = vmatpush.msra.mxu0 0.0
    %2486 = vmatpush.msra.mxu0 0.0
    %2487 = vmatpush.msra.mxu0 0.0
    %2488 = vmatpush.msra.mxu0 0.0
    %2489 = vmatpush.msra.mxu0 %v2337
    %2490 = vmatpush.msra.mxu0 %v2328
    %2491 = vmatpush.msra.mxu0 %v2319
    %2492 = vmatpush.msra.mxu0 %v2310
    %2493 = vmatpush.msra.mxu0 %v2301
    %2494 = vmatpush.msra.mxu0 %v2292
    %2495 = vmatpush.msra.mxu0 %v2283
    %2496 = vmatpush.msra.mxu0 %v2274
    %2497 = vmatpush.msra.mxu0 %v2265
    %2498 = vmatmul.f32.gmra.mxu0 %v2340
    %v2499 = vpop.f32.mrf.mxu0
    %v2500 = vadd.f32 0.0, %v2499
    %2501 = vdwg.mxu0
    %2502 = vmatpush.msra.mxu0 0.0
    %2503 = vmatpush.msra.mxu0 0.0
    %2504 = vmatpush.msra.mxu0 0.0
    %2505 = vmatpush.msra.mxu0 0.0
    %2506 = vmatpush.msra.mxu0 0.0
    %2507 = vmatpush.msra.mxu0 0.0
    %2508 = vmatpush.msra.mxu0 0.0
    %2509 = vmatpush.msra.mxu0 %v2338
    %2510 = vmatpush.msra.mxu0 %v2329
    %2511 = vmatpush.msra.mxu0 %v2320
    %2512 = vmatpush.msra.mxu0 %v2311
    %2513 = vmatpush.msra.mxu0 %v2302
    %2514 = vmatpush.msra.mxu0 %v2293
    %2515 = vmatpush.msra.mxu0 %v2284
    %2516 = vmatpush.msra.mxu0 %v2275
    %2517 = vmatpush.msra.mxu0 %v2266
    %2518 = vmatmul.f32.gmra.mxu0 %v2340
    %v2519 = vpop.f32.mrf.mxu0
    %v2520 = vadd.f32 0.0, %v2519
    %2521 = vdwg.mxu0
    %v2522 = vld [vmem:[%s6] sm:$0xff]
    %2524 = vset.pattern.permute.xlu0 0
    %2525 = vperm.xlu0 %2524, %v2522
    %v2526 = vpop.permute.xlu0 %2525
    %v2528 = vmul.f32 %v2360, %v2526
    %v2529 = vmul.f32 %v2380, %v2526
    %v2530 = vmul.f32 %v2400, %v2526
    %v2531 = vmul.f32 %v2420, %v2526
    %v2532 = vmul.f32 %v2440, %v2526
    %v2533 = vmul.f32 %v2460, %v2526
    %v2534 = vmul.f32 %v2480, %v2526
    %v2535 = vmul.f32 %v2500, %v2526
    %v2536 = vmul.f32 %v2520, %v2526
    %v2537 = vld [vmem:[%s7] sm:$0xff]
    %2539 = vset.pattern.permute.xlu0 0
    %2540 = vperm.xlu0 %2539, %v2537
    %v2541 = vpop.permute.xlu0 %2540
    %v2543 = vadd.f32 %v2528, %v2541
    %v2544 = vadd.f32 %v2529, %v2541
    %v2545 = vadd.f32 %v2530, %v2541
    %v2546 = vadd.f32 %v2531, %v2541
    %v2547 = vadd.f32 %v2532, %v2541
    %v2548 = vadd.f32 %v2533, %v2541
    %v2549 = vadd.f32 %v2534, %v2541
    %v2550 = vadd.f32 %v2535, %v2541
    %v2551 = vadd.f32 %v2536, %v2541
    %v2552 = vmax.f32 %v2543, 0.0
    %v2553 = vmax.f32 %v2544, 0.0
    %v2554 = vmax.f32 %v2545, 0.0
    %v2555 = vmax.f32 %v2546, 0.0
    %v2556 = vmax.f32 %v2547, 0.0
    %v2557 = vmax.f32 %v2548, 0.0
    %v2558 = vmax.f32 %v2549, 0.0
    %v2559 = vmax.f32 %v2550, 0.0
    %v2560 = vmax.f32 %v2551, 0.0
    %2561 = vst [vmem:[#allocation13] sm:$0xff] %v2552
    %2562 = vst [vmem:[#allocation13 + $0x8] sm:$0xff] %v2553
    %2563 = vst [vmem:[#allocation13 + $0x10] sm:$0xff] %v2554
    %2564 = vst [vmem:[#allocation13 + $0x18] sm:$0xff] %v2555
    %2565 = vst [vmem:[#allocation13 + $0x20] sm:$0xff] %v2556
    %2566 = vst [vmem:[#allocation13 + $0x28] sm:$0xff] %v2557
    %2567 = vst [vmem:[#allocation13 + $0x30] sm:$0xff] %v2558
    %2568 = vst [vmem:[#allocation13 + $0x38] sm:$0xff] %v2559
    %2569 = vst.msk [vmem:[#allocation13 + $0x40] sm:$0xff] %vm902, %v2560
    // Predicated region
    $region58: #{tpu_custom_call.1} parent=1 // pred_check
      _
    $region59: #{tpu_custom_call.1} parent=1 // pred_check_branch
      %2571 = sbr.rel (0) target = $region61
    $region60: #{tpu_custom_call.1} parent=1 // pred_region
      %2573 = vsyncadd [#allocation6], 0
      %s2575 = sshll.u32 [#allocation13], 4
      %s2576 = int_to_ptr.vmem [resolvable:$true] %s2575
      %s2577 = sshll.u32 %s9, 4
      %s2578 = int_to_ptr.hbm [resolvable:$true] %s2577
      %2580 = dma.vmem_to_hbm [thread:$0]  %s2576, 1152, %s2578, [#allocation6]
    $region61: #{tpu_custom_call.1} parent=1 // pred_fallthru
      _
    // Predicated region
    $region62: #{tpu_custom_call.1} parent=1 // pred_check
      _
    $region63: #{tpu_custom_call.1} parent=1 // pred_check_branch
      %2582 = sbr.rel (0) target = $region65
    $region64: #{tpu_custom_call.1} parent=1 // pred_region
      %2584 = dma.done [#allocation6], 1152
    $region65: #{tpu_custom_call.1} parent=1 // pred_fallthru
      _
    %2585 = vsyncpa [#allocation5], 1
    %2586 = vsyncpa [#allocation8], 1
    %2587 = vsyncpa [#allocation11], 1
    %2588 = vsyncpa [#allocation6], 1

</llo_original>
